<compile_context>
chip_gen: v6e
topology: v6e:2x2x1
jax: 0.10.0
libtpu: 0.0.40
codegen_flags: <defaults>
</compile_context>

<pallas_src>
import functools
import math

import jax
import jax.numpy as jnp
from jax.experimental import pallas as pl
from jax.experimental.pallas import tpu as pltpu


def _round_up(x, m):
    return ((x + m - 1) // m) * m


def _vmem_budget_bytes():
    """Generation-aware VMEM budget: 85% of physical VMEM (v5e/v6e: 128 MiB,
    v7x: 64 MiB).  Falls back to a conservative 64 MiB if the query fails."""
    try:
        cap = int(pltpu.get_tpu_info().vmem_capacity_bytes)
    except Exception:  # heuristic only: info unavailable on this jax/backend
        cap = 64 * 1024 * 1024
    return int(cap * 0.85)


def _default_exp_dtype():
    """bf16 exp uses the bf16 EUP path on v6e/v7x; v5e and older have no bf16
    EUP/VPU, so keep the softmax exp in f32 there."""
    try:
        kind = jax.devices()[0].device_kind.lower()
    except Exception:  # heuristic only
        return jnp.float32
    if any(tag in kind for tag in ("v2", "v3", "v4", "v5")):
        return jnp.float32
    return jnp.bfloat16


def _per_step_vmem_bytes(tq, lk, e, cs, out_is, need_weights, attn_is):
    """Rough per-grid-step VMEM footprint (double-buffered inputs/outputs plus
    f32 working values) used only to pick the q-tile size."""
    inp = 2 * (tq * e + 2 * e * lk) * cs            # q tile + K_proj^T + V_proj
    wgt = 2 * 2 * e * e * cs + 4 * e * 4            # wq/wo (+ tiny biases)
    out = 2 * tq * e * out_is + (2 * tq * lk * attn_is if need_weights else 0)
    work = 4 * (2 * tq * e + 3 * tq * lk)           # q_proj, ctx, scores/probs (f32)
    return inp + wgt + out + work


def _choose_q_tile(lq, lk, e, cs, out_is, need_weights, attn_is, budget, max_q_tile):
    """Shrink the q tile (not the vmem limit) until the estimate fits the budget."""
    tq = min(_round_up(lq, 8), max(_round_up(max_q_tile, 8), 8))
    while tq > 64 and _per_step_vmem_bytes(tq, lk, e, cs, out_is,
                                           need_weights, attn_is) > budget:
        tq = max(64, _round_up(tq // 2, 8))
    return tq


def _mha_kernel(q_ref, kT_ref, v_ref, wq_ref, wo_ref, bq_ref, bo_ref,
                out_ref, *maybe_attn_ref,
                nhead, head_dim, need_weights, compute_dtype, exp_dtype):
    """One (batch, q-tile) grid step: full MHA for a TQ-row query slice.

    q_ref:   (TQ, E)           compute_dtype  raw queries
    kT_ref:  (nhead, hd, Lk)   compute_dtype  pre-projected K, pre-transposed
    v_ref:   (nhead, Lk, hd)   compute_dtype  pre-projected V
    wq_ref:  (E, E)            compute_dtype  merged Q weight (1/sqrt(hd) folded in)
    wo_ref:  (E, E)            compute_dtype  merged output-projection weight
    bq_ref:  (1, E) f32 (scaled);  bo_ref: (1, E) f32
    out_ref: (TQ, E);  attn_ref: (TQ, Lk) (only when need_weights)
    """
    attn_ref = maybe_attn_ref[0] if need_weights else None

    q = q_ref[...]
    tq, _ = q.shape
    lk = kT_ref.shape[-1]

    # Merged, lane-dense Q projection: one (TQ,E)@(E,E) MXU matmul with f32 acc.
    q_proj = jnp.dot(q, wq_ref[...], preferred_element_type=jnp.float32) + bq_ref[...]

    ctx_heads = []
    attn_acc = jnp.zeros((tq, lk), jnp.float32) if need_weights else None

    # Static head loop: head offsets are compile-time constants so the Q lane
    # slice and the final lane concat need no dynamic lane indexing; per-head
    # scores/probs die at the end of each iteration.
    for h in range(nhead):
        qh = q_proj[:, h * head_dim:(h + 1) * head_dim].astype(compute_dtype)
        # K arrives pre-transposed (hd, Lk): plain matmul, Lk lane-dense,
        # no XLU transpose per head.
        s = jnp.dot(qh, kT_ref[h], preferred_element_type=jnp.float32)      # (TQ, Lk)
        m = jnp.max(s, axis=-1, keepdims=True)
        p = jnp.exp((s - m).astype(exp_dtype))                              # EUP
        denom = jnp.sum(p.astype(jnp.float32), axis=-1, keepdims=True)
        inv = pl.reciprocal(denom, approx=True)                             # EUP slot
        ctx_h = jnp.dot(p.astype(compute_dtype), v_ref[h],
                        preferred_element_type=jnp.float32) * inv           # (TQ, hd)
        ctx_heads.append(ctx_h)
        if need_weights:
            attn_acc = attn_acc + p.astype(jnp.float32) * inv

    # Lane-concatenate heads -> (TQ, E); single merged output projection.
    ctx = jnp.concatenate(ctx_heads, axis=-1).astype(compute_dtype)
    out = jnp.dot(ctx, wo_ref[...], preferred_element_type=jnp.float32) + bo_ref[...]
    out_ref[...] = out.astype(out_ref.dtype)
    if need_weights:
        attn_ref[...] = (attn_acc * (1.0 / nhead)).astype(attn_ref.dtype)


def transformer_encoder_layer(q, k, v, params, nhead, *,
                              need_weights=True,
                              compute_dtype=jnp.bfloat16,
                              exp_dtype=None,
                              weights_dtype=jnp.float32,
                              max_q_tile=256):
    """q, k, v: (B, L, E) batch-first, matching the PyTorch module's inputs.

    need_weights=True matches nn.MultiheadAttention's return signature; callers
    that ignore the averaged attention weights should pass False (saves the
    (B,Lq,Lk) HBM write and the f32 accumulator)."""
    B, Lq, E = q.shape
    Lk = k.shape[1]
    assert E % nhead == 0
    hd = E // nhead
    out_dtype = q.dtype
    scale = 1.0 / math.sqrt(hd)
    if exp_dtype is None:
        exp_dtype = _default_exp_dtype()

    in_w = params["in_proj_weight"].astype(jnp.float32)     # (3E, E)
    in_b = params["in_proj_bias"].astype(jnp.float32)       # (3E,)
    out_w = params["out_proj_weight"].astype(jnp.float32)   # (E, E)
    out_b = params["out_proj_bias"].astype(jnp.float32)     # (E,)

    # Q projection stays fused in the kernel (one lane-dense (TQ,E)@(E,E)
    # matmul); 1/sqrt(hd) is folded into its weight and bias.
    wq_m = (in_w[:E].T * scale).astype(compute_dtype)        # (E, E)
    bq_m = (in_b[:E] * scale).reshape(1, E)                  # f32
    wo_m = out_w.T.astype(compute_dtype)                     # (E, E)
    bo_m = out_b.reshape(1, E)                               # f32

    # K/V projections hoisted out of the grid: computed once per batch by XLA
    # in f32, then laid out per-head and pre-transposed for the kernel.
    k_proj = jnp.einsum("ble,fe->blf", k.astype(jnp.float32), in_w[E:2 * E]) + in_b[E:2 * E]
    v_proj = jnp.einsum("ble,fe->blf", v.astype(jnp.float32), in_w[2 * E:]) + in_b[2 * E:]
    kT = k_proj.reshape(B, Lk, nhead, hd).transpose(0, 2, 3, 1).astype(compute_dtype)  # (B,H,hd,Lk)
    vP = v_proj.reshape(B, Lk, nhead, hd).transpose(0, 2, 1, 3).astype(compute_dtype)  # (B,H,Lk,hd)

    budget = _vmem_budget_bytes()
    cs = jnp.dtype(compute_dtype).itemsize
    out_is = jnp.dtype(out_dtype).itemsize
    attn_is = jnp.dtype(weights_dtype).itemsize
    TQ = _choose_q_tile(Lq, Lk, E, cs, out_is, need_weights, attn_is, budget, max_q_tile)
    nq = -(-Lq // TQ)
    Lq_pad = nq * TQ

    qc = q.astype(compute_dtype)
    if Lq_pad != Lq:
        qc = jnp.pad(qc, ((0, 0), (0, Lq_pad - Lq), (0, 0)))

    kernel = functools.partial(_mha_kernel, nhead=nhead, head_dim=hd,
                               need_weights=need_weights,
                               compute_dtype=compute_dtype, exp_dtype=exp_dtype)

    out_shapes = [jax.ShapeDtypeStruct((B, Lq_pad, E), out_dtype)]
    out_specs = [pl.BlockSpec((None, TQ, E), lambda b, qi: (b, qi, 0))]
    if need_weights:
        out_shapes.append(jax.ShapeDtypeStruct((B, Lq_pad, Lk), weights_dtype))
        out_specs.append(pl.BlockSpec((None, TQ, Lk), lambda b, qi: (b, qi, 0)))

    in_specs = [
        pl.BlockSpec((None, TQ, E), lambda b, qi: (b, qi, 0)),            # q tile
        pl.BlockSpec((None, nhead, hd, Lk), lambda b, qi: (b, 0, 0, 0)),  # K_proj^T (per batch)
        pl.BlockSpec((None, nhead, Lk, hd), lambda b, qi: (b, 0, 0, 0)),  # V_proj  (per batch)
        pl.BlockSpec((E, E), lambda b, qi: (0, 0)),                       # wq (grid-invariant)
        pl.BlockSpec((E, E), lambda b, qi: (0, 0)),                       # wo (grid-invariant)
        pl.BlockSpec((1, E), lambda b, qi: (0, 0)),                       # bq
        pl.BlockSpec((1, E), lambda b, qi: (0, 0)),                       # bo
    ]

    # Batch is the outermost grid axis so a 2-TC (v7x) core-parallel split sees
    # contiguous q tiles of one batch (no redundant K/V DMA across cores).
    res = pl.pallas_call(
        kernel,
        out_shape=tuple(out_shapes),
        grid=(B, nq),
        in_specs=in_specs,
        out_specs=tuple(out_specs),
        compiler_params=pltpu.CompilerParams(
            dimension_semantics=("parallel", "parallel"),
            vmem_limit_bytes=budget),
    )(qc, kT, vP, wq_m, wo_m, bq_m, bo_m)

    if need_weights:
        out, attn = res
        return out[:, :Lq], attn[:, :Lq]
    (out,) = res
    return out[:, :Lq], None


def _reference(q, k, v, params, nhead):
    """Pure-JAX f32 reference of nn.MultiheadAttention (dropout=0, no masks)."""
    B, Lq, E = q.shape
    Lk = k.shape[1]
    hd = E // nhead
    in_w, in_b = params["in_proj_weight"], params["in_proj_bias"]
    Q = q @ in_w[:E].T + in_b[:E]
    K = k @ in_w[E:2 * E].T + in_b[E:2 * E]
    V = v @ in_w[2 * E:].T + in_b[2 * E:]
    Qh = Q.reshape(B, Lq, nhead, hd).transpose(0, 2, 1, 3)
    Kh = K.reshape(B, Lk, nhead, hd).transpose(0, 2, 1, 3)
    Vh = V.reshape(B, Lk, nhead, hd).transpose(0, 2, 1, 3)
    s = jnp.einsum("bhqd,bhkd->bhqk", Qh, Kh) / math.sqrt(hd)
    a = jax.nn.softmax(s, axis=-1)
    ctx = jnp.einsum("bhqk,bhkd->bhqd", a, Vh).transpose(0, 2, 1, 3).reshape(B, Lq, E)
    out = ctx @ params["out_proj_weight"].T + params["out_proj_bias"]
    return out, a.mean(axis=1)


if __name__ == "__main__":
    B, L, E, H = 2, 8, 32, 4

    key = jax.random.PRNGKey(0)
    keys = jax.random.split(key, 7)
    q = jax.random.normal(keys[0], (B, L, E), jnp.float32)
    k = jax.random.normal(keys[1], (B, L, E), jnp.float32)
    v = jax.random.normal(keys[2], (B, L, E), jnp.float32)

    # Deterministic synthetic parameters (shapes per nn.MultiheadAttention).
    params = {
        "in_proj_weight": 0.1 * jax.random.normal(keys[3], (3 * E, E), jnp.float32),
        "in_proj_bias":   0.1 * jax.random.normal(keys[4], (3 * E,), jnp.float32),
        "out_proj_weight": 0.1 * jax.random.normal(keys[5], (E, E), jnp.float32),
        "out_proj_bias":   0.1 * jax.random.normal(keys[6], (E,), jnp.float32),
    }

    out, attn = transformer_encoder_layer(q, k, v, params, H)
    jax.block_until_ready((out, attn))

    ref_out, ref_attn = _reference(q, k, v, params, H)
    assert out.shape == (B, L, E) and attn.shape == (B, L, L)
    # bf16 MXU operands (+ optional bf16 exp) and approx reciprocal -> relaxed
    # tolerance vs the f32 reference.
    assert jnp.allclose(out, ref_out, rtol=2e-2, atol=2e-2), \
        float(jnp.max(jnp.abs(out - ref_out)))
    assert jnp.allclose(attn, ref_attn, rtol=2e-2, atol=1e-2), \
        float(jnp.max(jnp.abs(attn - ref_attn)))

    print("KERNEL_OK")
</pallas_src>

<mosaic_0001>
module attributes {stable_mosaic.version = 11 : i64} {
  func.func @_mha_kernel(%arg0: i32, %arg1: i32, %arg2: memref<1x8x32xbf16, #tpu.memory_space<vmem>>, %arg3: memref<1x4x8x8xbf16, #tpu.memory_space<vmem>>, %arg4: memref<1x4x8x8xbf16, #tpu.memory_space<vmem>>, %arg5: memref<32x32xbf16, #tpu.memory_space<vmem>>, %arg6: memref<32x32xbf16, #tpu.memory_space<vmem>>, %arg7: memref<1x32xf32, #tpu.memory_space<vmem>>, %arg8: memref<1x32xf32, #tpu.memory_space<vmem>>, %arg9: memref<1x8x32xf32, #tpu.memory_space<vmem>>, %arg10: memref<1x8x8xf32, #tpu.memory_space<vmem>>) attributes {dimension_semantics = [#tpu.dimension_semantics<parallel>, #tpu.dimension_semantics<parallel>], iteration_bounds = array<i64: 2, 1>, scalar_prefetch = 0 : i64, scratch_operands = 0 : i64, tpu.core_type = #tpu.core_type<tc>, window_params = [{transform_indices = @transform_0, window_bounds = array<i64: 1, 8, 32>}, {transform_indices = @transform_1, window_bounds = array<i64: 1, 4, 8, 8>}, {transform_indices = @transform_2, window_bounds = array<i64: 1, 4, 8, 8>}, {pipeline_mode = #tpu.pipeline_mode<synchronous>, transform_indices = @transform_3, window_bounds = array<i64: 32, 32>}, {pipeline_mode = #tpu.pipeline_mode<synchronous>, transform_indices = @transform_4, window_bounds = array<i64: 32, 32>}, {pipeline_mode = #tpu.pipeline_mode<synchronous>, transform_indices = @transform_5, window_bounds = array<i64: 1, 32>}, {pipeline_mode = #tpu.pipeline_mode<synchronous>, transform_indices = @transform_6, window_bounds = array<i64: 1, 32>}, {transform_indices = @transform_7, window_bounds = array<i64: 1, 8, 32>}, {transform_indices = @transform_8, window_bounds = array<i64: 1, 8, 8>}]} {
    %c0 = arith.constant 0 : index
    %c0_0 = arith.constant 0 : index
    %c0_1 = arith.constant 0 : index
    %0 = vector.load %arg2[%c0, %c0_0, %c0_1] : memref<1x8x32xbf16, #tpu.memory_space<vmem>>, vector<1x8x32xbf16>
    %1 = vector.shape_cast %0 : vector<1x8x32xbf16> to vector<8x32xbf16>
    %c0_2 = arith.constant 0 : index
    %c0_3 = arith.constant 0 : index
    %2 = vector.load %arg5[%c0_2, %c0_3] : memref<32x32xbf16, #tpu.memory_space<vmem>>, vector<32x32xbf16>
    %cst = arith.constant dense<0.000000e+00> : vector<8x32xf32>
    %3 = tpu.matmul %1, %2, %cst {dimension_numbers = #tpu.dot_dimension_numbers<[1], [0], [0], [1], [0, 0, 1, 1], [], []>} : vector<8x32xbf16>, vector<32x32xbf16>, vector<8x32xf32> -> vector<8x32xf32>
    %c0_4 = arith.constant 0 : index
    %c0_5 = arith.constant 0 : index
    %4 = vector.load %arg7[%c0_4, %c0_5] : memref<1x32xf32, #tpu.memory_space<vmem>>, vector<1x32xf32>
    %5 = vector.broadcast %4 : vector<1x32xf32> to vector<8x32xf32>
    %6 = arith.addf %3, %5 : vector<8x32xf32>
    %cst_6 = arith.constant 0.000000e+00 : f32
    %7 = vector.broadcast %cst_6 : f32 to vector<8x8xf32>
    %8 = vector.extract_strided_slice %6 {offsets = [0, 0], sizes = [8, 8], strides = [1, 1]} : vector<8x32xf32> to vector<8x8xf32>
    %9 = arith.truncf %8 : vector<8x8xf32> to vector<8x8xbf16>
    %c0_7 = arith.constant 0 : index
    %c0_8 = arith.constant 0 : index
    %c0_9 = arith.constant 0 : index
    %c0_10 = arith.constant 0 : index
    %10 = vector.load %arg3[%c0_7, %c0_8, %c0_9, %c0_10] : memref<1x4x8x8xbf16, #tpu.memory_space<vmem>>, vector<1x1x8x8xbf16>
    %11 = vector.shape_cast %10 : vector<1x1x8x8xbf16> to vector<8x8xbf16>
    %cst_11 = arith.constant dense<0.000000e+00> : vector<8x8xf32>
    %12 = tpu.matmul %9, %11, %cst_11 {dimension_numbers = #tpu.dot_dimension_numbers<[1], [0], [0], [1], [0, 0, 1, 1], [], []>} : vector<8x8xbf16>, vector<8x8xbf16>, vector<8x8xf32> -> vector<8x8xf32>
    %cst_12 = arith.constant dense<0xFF800000> : vector<8xf32>
    %13 = vector.multi_reduction <maximumf>, %12, %cst_12 [1] : vector<8x8xf32> to vector<8xf32>
    %14 = vector.shape_cast %13 : vector<8xf32> to vector<8x1xf32>
    %15 = vector.broadcast %14 : vector<8x1xf32> to vector<8x8xf32>
    %16 = arith.subf %12, %15 : vector<8x8xf32>
    %17 = arith.truncf %16 : vector<8x8xf32> to vector<8x8xbf16>
    %18 = math.exp %17 : vector<8x8xbf16>
    %19 = arith.extf %18 : vector<8x8xbf16> to vector<8x8xf32>
    %cst_13 = arith.constant dense<0.000000e+00> : vector<8xf32>
    %20 = vector.multi_reduction <add>, %19, %cst_13 [1] : vector<8x8xf32> to vector<8xf32>
    %21 = vector.shape_cast %20 : vector<8xf32> to vector<8x1xf32>
    %22 = tpu.reciprocal %21 {approx = true} : vector<8x1xf32> -> vector<8x1xf32>
    %c0_14 = arith.constant 0 : index
    %c0_15 = arith.constant 0 : index
    %c0_16 = arith.constant 0 : index
    %c0_17 = arith.constant 0 : index
    %23 = vector.load %arg4[%c0_14, %c0_15, %c0_16, %c0_17] : memref<1x4x8x8xbf16, #tpu.memory_space<vmem>>, vector<1x1x8x8xbf16>
    %24 = vector.shape_cast %23 : vector<1x1x8x8xbf16> to vector<8x8xbf16>
    %cst_18 = arith.constant dense<0.000000e+00> : vector<8x8xf32>
    %25 = tpu.matmul %18, %24, %cst_18 {dimension_numbers = #tpu.dot_dimension_numbers<[1], [0], [0], [1], [0, 0, 1, 1], [], []>} : vector<8x8xbf16>, vector<8x8xbf16>, vector<8x8xf32> -> vector<8x8xf32>
    %26 = vector.broadcast %22 : vector<8x1xf32> to vector<8x8xf32>
    %27 = arith.mulf %25, %26 : vector<8x8xf32>
    %28 = arith.extf %18 : vector<8x8xbf16> to vector<8x8xf32>
    %29 = vector.broadcast %22 : vector<8x1xf32> to vector<8x8xf32>
    %30 = arith.mulf %28, %29 : vector<8x8xf32>
    %31 = arith.addf %7, %30 : vector<8x8xf32>
    %32 = vector.extract_strided_slice %6 {offsets = [0, 8], sizes = [8, 8], strides = [1, 1]} : vector<8x32xf32> to vector<8x8xf32>
    %33 = arith.truncf %32 : vector<8x8xf32> to vector<8x8xbf16>
    %c0_19 = arith.constant 0 : index
    %c1 = arith.constant 1 : index
    %c0_20 = arith.constant 0 : index
    %c0_21 = arith.constant 0 : index
    %34 = vector.load %arg3[%c0_19, %c1, %c0_20, %c0_21] : memref<1x4x8x8xbf16, #tpu.memory_space<vmem>>, vector<1x1x8x8xbf16>
    %35 = vector.shape_cast %34 : vector<1x1x8x8xbf16> to vector<8x8xbf16>
    %cst_22 = arith.constant dense<0.000000e+00> : vector<8x8xf32>
    %36 = tpu.matmul %33, %35, %cst_22 {dimension_numbers = #tpu.dot_dimension_numbers<[1], [0], [0], [1], [0, 0, 1, 1], [], []>} : vector<8x8xbf16>, vector<8x8xbf16>, vector<8x8xf32> -> vector<8x8xf32>
    %cst_23 = arith.constant dense<0xFF800000> : vector<8xf32>
    %37 = vector.multi_reduction <maximumf>, %36, %cst_23 [1] : vector<8x8xf32> to vector<8xf32>
    %38 = vector.shape_cast %37 : vector<8xf32> to vector<8x1xf32>
    %39 = vector.broadcast %38 : vector<8x1xf32> to vector<8x8xf32>
    %40 = arith.subf %36, %39 : vector<8x8xf32>
    %41 = arith.truncf %40 : vector<8x8xf32> to vector<8x8xbf16>
    %42 = math.exp %41 : vector<8x8xbf16>
    %43 = arith.extf %42 : vector<8x8xbf16> to vector<8x8xf32>
    %cst_24 = arith.constant dense<0.000000e+00> : vector<8xf32>
    %44 = vector.multi_reduction <add>, %43, %cst_24 [1] : vector<8x8xf32> to vector<8xf32>
    %45 = vector.shape_cast %44 : vector<8xf32> to vector<8x1xf32>
    %46 = tpu.reciprocal %45 {approx = true} : vector<8x1xf32> -> vector<8x1xf32>
    %c0_25 = arith.constant 0 : index
    %c1_26 = arith.constant 1 : index
    %c0_27 = arith.constant 0 : index
    %c0_28 = arith.constant 0 : index
    %47 = vector.load %arg4[%c0_25, %c1_26, %c0_27, %c0_28] : memref<1x4x8x8xbf16, #tpu.memory_space<vmem>>, vector<1x1x8x8xbf16>
    %48 = vector.shape_cast %47 : vector<1x1x8x8xbf16> to vector<8x8xbf16>
    %cst_29 = arith.constant dense<0.000000e+00> : vector<8x8xf32>
    %49 = tpu.matmul %42, %48, %cst_29 {dimension_numbers = #tpu.dot_dimension_numbers<[1], [0], [0], [1], [0, 0, 1, 1], [], []>} : vector<8x8xbf16>, vector<8x8xbf16>, vector<8x8xf32> -> vector<8x8xf32>
    %50 = vector.broadcast %46 : vector<8x1xf32> to vector<8x8xf32>
    %51 = arith.mulf %49, %50 : vector<8x8xf32>
    %52 = arith.extf %42 : vector<8x8xbf16> to vector<8x8xf32>
    %53 = vector.broadcast %46 : vector<8x1xf32> to vector<8x8xf32>
    %54 = arith.mulf %52, %53 : vector<8x8xf32>
    %55 = arith.addf %31, %54 : vector<8x8xf32>
    %56 = vector.extract_strided_slice %6 {offsets = [0, 16], sizes = [8, 8], strides = [1, 1]} : vector<8x32xf32> to vector<8x8xf32>
    %57 = arith.truncf %56 : vector<8x8xf32> to vector<8x8xbf16>
    %c0_30 = arith.constant 0 : index
    %c2 = arith.constant 2 : index
    %c0_31 = arith.constant 0 : index
    %c0_32 = arith.constant 0 : index
    %58 = vector.load %arg3[%c0_30, %c2, %c0_31, %c0_32] : memref<1x4x8x8xbf16, #tpu.memory_space<vmem>>, vector<1x1x8x8xbf16>
    %59 = vector.shape_cast %58 : vector<1x1x8x8xbf16> to vector<8x8xbf16>
    %cst_33 = arith.constant dense<0.000000e+00> : vector<8x8xf32>
    %60 = tpu.matmul %57, %59, %cst_33 {dimension_numbers = #tpu.dot_dimension_numbers<[1], [0], [0], [1], [0, 0, 1, 1], [], []>} : vector<8x8xbf16>, vector<8x8xbf16>, vector<8x8xf32> -> vector<8x8xf32>
    %cst_34 = arith.constant dense<0xFF800000> : vector<8xf32>
    %61 = vector.multi_reduction <maximumf>, %60, %cst_34 [1] : vector<8x8xf32> to vector<8xf32>
    %62 = vector.shape_cast %61 : vector<8xf32> to vector<8x1xf32>
    %63 = vector.broadcast %62 : vector<8x1xf32> to vector<8x8xf32>
    %64 = arith.subf %60, %63 : vector<8x8xf32>
    %65 = arith.truncf %64 : vector<8x8xf32> to vector<8x8xbf16>
    %66 = math.exp %65 : vector<8x8xbf16>
    %67 = arith.extf %66 : vector<8x8xbf16> to vector<8x8xf32>
    %cst_35 = arith.constant dense<0.000000e+00> : vector<8xf32>
    %68 = vector.multi_reduction <add>, %67, %cst_35 [1] : vector<8x8xf32> to vector<8xf32>
    %69 = vector.shape_cast %68 : vector<8xf32> to vector<8x1xf32>
    %70 = tpu.reciprocal %69 {approx = true} : vector<8x1xf32> -> vector<8x1xf32>
    %c0_36 = arith.constant 0 : index
    %c2_37 = arith.constant 2 : index
    %c0_38 = arith.constant 0 : index
    %c0_39 = arith.constant 0 : index
    %71 = vector.load %arg4[%c0_36, %c2_37, %c0_38, %c0_39] : memref<1x4x8x8xbf16, #tpu.memory_space<vmem>>, vector<1x1x8x8xbf16>
    %72 = vector.shape_cast %71 : vector<1x1x8x8xbf16> to vector<8x8xbf16>
    %cst_40 = arith.constant dense<0.000000e+00> : vector<8x8xf32>
    %73 = tpu.matmul %66, %72, %cst_40 {dimension_numbers = #tpu.dot_dimension_numbers<[1], [0], [0], [1], [0, 0, 1, 1], [], []>} : vector<8x8xbf16>, vector<8x8xbf16>, vector<8x8xf32> -> vector<8x8xf32>
    %74 = vector.broadcast %70 : vector<8x1xf32> to vector<8x8xf32>
    %75 = arith.mulf %73, %74 : vector<8x8xf32>
    %76 = arith.extf %66 : vector<8x8xbf16> to vector<8x8xf32>
    %77 = vector.broadcast %70 : vector<8x1xf32> to vector<8x8xf32>
    %78 = arith.mulf %76, %77 : vector<8x8xf32>
    %79 = arith.addf %55, %78 : vector<8x8xf32>
    %80 = vector.extract_strided_slice %6 {offsets = [0, 24], sizes = [8, 8], strides = [1, 1]} : vector<8x32xf32> to vector<8x8xf32>
    %81 = arith.truncf %80 : vector<8x8xf32> to vector<8x8xbf16>
    %c0_41 = arith.constant 0 : index
    %c3 = arith.constant 3 : index
    %c0_42 = arith.constant 0 : index
    %c0_43 = arith.constant 0 : index
    %82 = vector.load %arg3[%c0_41, %c3, %c0_42, %c0_43] : memref<1x4x8x8xbf16, #tpu.memory_space<vmem>>, vector<1x1x8x8xbf16>
    %83 = vector.shape_cast %82 : vector<1x1x8x8xbf16> to vector<8x8xbf16>
    %cst_44 = arith.constant dense<0.000000e+00> : vector<8x8xf32>
    %84 = tpu.matmul %81, %83, %cst_44 {dimension_numbers = #tpu.dot_dimension_numbers<[1], [0], [0], [1], [0, 0, 1, 1], [], []>} : vector<8x8xbf16>, vector<8x8xbf16>, vector<8x8xf32> -> vector<8x8xf32>
    %cst_45 = arith.constant dense<0xFF800000> : vector<8xf32>
    %85 = vector.multi_reduction <maximumf>, %84, %cst_45 [1] : vector<8x8xf32> to vector<8xf32>
    %86 = vector.shape_cast %85 : vector<8xf32> to vector<8x1xf32>
    %87 = vector.broadcast %86 : vector<8x1xf32> to vector<8x8xf32>
    %88 = arith.subf %84, %87 : vector<8x8xf32>
    %89 = arith.truncf %88 : vector<8x8xf32> to vector<8x8xbf16>
    %90 = math.exp %89 : vector<8x8xbf16>
    %91 = arith.extf %90 : vector<8x8xbf16> to vector<8x8xf32>
    %cst_46 = arith.constant dense<0.000000e+00> : vector<8xf32>
    %92 = vector.multi_reduction <add>, %91, %cst_46 [1] : vector<8x8xf32> to vector<8xf32>
    %93 = vector.shape_cast %92 : vector<8xf32> to vector<8x1xf32>
    %94 = tpu.reciprocal %93 {approx = true} : vector<8x1xf32> -> vector<8x1xf32>
    %c0_47 = arith.constant 0 : index
    %c3_48 = arith.constant 3 : index
    %c0_49 = arith.constant 0 : index
    %c0_50 = arith.constant 0 : index
    %95 = vector.load %arg4[%c0_47, %c3_48, %c0_49, %c0_50] : memref<1x4x8x8xbf16, #tpu.memory_space<vmem>>, vector<1x1x8x8xbf16>
    %96 = vector.shape_cast %95 : vector<1x1x8x8xbf16> to vector<8x8xbf16>
    %cst_51 = arith.constant dense<0.000000e+00> : vector<8x8xf32>
    %97 = tpu.matmul %90, %96, %cst_51 {dimension_numbers = #tpu.dot_dimension_numbers<[1], [0], [0], [1], [0, 0, 1, 1], [], []>} : vector<8x8xbf16>, vector<8x8xbf16>, vector<8x8xf32> -> vector<8x8xf32>
    %98 = vector.broadcast %94 : vector<8x1xf32> to vector<8x8xf32>
    %99 = arith.mulf %97, %98 : vector<8x8xf32>
    %100 = arith.extf %90 : vector<8x8xbf16> to vector<8x8xf32>
    %101 = vector.broadcast %94 : vector<8x1xf32> to vector<8x8xf32>
    %102 = arith.mulf %100, %101 : vector<8x8xf32>
    %103 = arith.addf %79, %102 : vector<8x8xf32>
    %104 = tpu.concatenate %27, %51, %75, %99 in 1 : vector<8x8xf32>, vector<8x8xf32>, vector<8x8xf32>, vector<8x8xf32> -> vector<8x32xf32>
    %105 = arith.truncf %104 : vector<8x32xf32> to vector<8x32xbf16>
    %c0_52 = arith.constant 0 : index
    %c0_53 = arith.constant 0 : index
    %106 = vector.load %arg6[%c0_52, %c0_53] : memref<32x32xbf16, #tpu.memory_space<vmem>>, vector<32x32xbf16>
    %cst_54 = arith.constant dense<0.000000e+00> : vector<8x32xf32>
    %107 = tpu.matmul %105, %106, %cst_54 {dimension_numbers = #tpu.dot_dimension_numbers<[1], [0], [0], [1], [0, 0, 1, 1], [], []>} : vector<8x32xbf16>, vector<32x32xbf16>, vector<8x32xf32> -> vector<8x32xf32>
    %c0_55 = arith.constant 0 : index
    %c0_56 = arith.constant 0 : index
    %108 = vector.load %arg8[%c0_55, %c0_56] : memref<1x32xf32, #tpu.memory_space<vmem>>, vector<1x32xf32>
    %109 = vector.broadcast %108 : vector<1x32xf32> to vector<8x32xf32>
    %110 = arith.addf %107, %109 : vector<8x32xf32>
    %c0_57 = arith.constant 0 : index
    %c0_58 = arith.constant 0 : index
    %c0_59 = arith.constant 0 : index
    %111 = vector.load %arg9[%c0_57, %c0_58, %c0_59] : memref<1x8x32xf32, #tpu.memory_space<vmem>>, vector<1x8x32xf32>
    %112 = vector.shape_cast %111 : vector<1x8x32xf32> to vector<8x32xf32>
    %113 = vector.shape_cast %110 : vector<8x32xf32> to vector<1x8x32xf32>
    tpu.vector_store %arg9[%c0_57, %c0_58, %c0_59], %113 {strides = array<i32>} : memref<1x8x32xf32, #tpu.memory_space<vmem>>, vector<1x8x32xf32>,
    %cst_60 = arith.constant 2.500000e-01 : f32
    %114 = vector.broadcast %cst_60 : f32 to vector<8x8xf32>
    %115 = arith.mulf %103, %114 : vector<8x8xf32>
    %c0_61 = arith.constant 0 : index
    %c0_62 = arith.constant 0 : index
    %c0_63 = arith.constant 0 : index
    %116 = vector.load %arg10[%c0_61, %c0_62, %c0_63] : memref<1x8x8xf32, #tpu.memory_space<vmem>>, vector<1x8x8xf32>
    %117 = vector.shape_cast %116 : vector<1x8x8xf32> to vector<8x8xf32>
    %118 = vector.shape_cast %115 : vector<8x8xf32> to vector<1x8x8xf32>
    tpu.vector_store %arg10[%c0_61, %c0_62, %c0_63], %118 {strides = array<i32>} : memref<1x8x8xf32, #tpu.memory_space<vmem>>, vector<1x8x8xf32>,
    return
  }
  func.func @transform_0(%arg0: i32, %arg1: i32) -> (i32, i32, i32) {
    %c0_i32 = arith.constant 0 : i32
    %c0_i32_0 = arith.constant 0 : i32
    return %arg0, %arg1, %c0_i32 : i32, i32, i32
  }
  func.func @transform_1(%arg0: i32, %arg1: i32) -> (i32, i32, i32, i32) {
    %c0_i32 = arith.constant 0 : i32
    %c0_i32_0 = arith.constant 0 : i32
    %c0_i32_1 = arith.constant 0 : i32
    %c0_i32_2 = arith.constant 0 : i32
    return %arg0, %c0_i32, %c0_i32_0, %c0_i32_1 : i32, i32, i32, i32
  }
  func.func @transform_2(%arg0: i32, %arg1: i32) -> (i32, i32, i32, i32) {
    %c0_i32 = arith.constant 0 : i32
    %c0_i32_0 = arith.constant 0 : i32
    %c0_i32_1 = arith.constant 0 : i32
    %c0_i32_2 = arith.constant 0 : i32
    return %arg0, %c0_i32, %c0_i32_0, %c0_i32_1 : i32, i32, i32, i32
  }
  func.func @transform_3(%arg0: i32, %arg1: i32) -> (i32, i32) {
    %c0_i32 = arith.constant 0 : i32
    %c0_i32_0 = arith.constant 0 : i32
    %c0_i32_1 = arith.constant 0 : i32
    return %c0_i32, %c0_i32_0 : i32, i32
  }
  func.func @transform_4(%arg0: i32, %arg1: i32) -> (i32, i32) {
    %c0_i32 = arith.constant 0 : i32
    %c0_i32_0 = arith.constant 0 : i32
    %c0_i32_1 = arith.constant 0 : i32
    return %c0_i32, %c0_i32_0 : i32, i32
  }
  func.func @transform_5(%arg0: i32, %arg1: i32) -> (i32, i32) {
    %c0_i32 = arith.constant 0 : i32
    %c0_i32_0 = arith.constant 0 : i32
    %c0_i32_1 = arith.constant 0 : i32
    return %c0_i32, %c0_i32_0 : i32, i32
  }
  func.func @transform_6(%arg0: i32, %arg1: i32) -> (i32, i32) {
    %c0_i32 = arith.constant 0 : i32
    %c0_i32_0 = arith.constant 0 : i32
    %c0_i32_1 = arith.constant 0 : i32
    return %c0_i32, %c0_i32_0 : i32, i32
  }
  func.func @transform_7(%arg0: i32, %arg1: i32) -> (i32, i32, i32) {
    %c0_i32 = arith.constant 0 : i32
    %c0_i32_0 = arith.constant 0 : i32
    return %arg0, %arg1, %c0_i32 : i32, i32, i32
  }
  func.func @transform_8(%arg0: i32, %arg1: i32) -> (i32, i32, i32) {
    %c0_i32 = arith.constant 0 : i32
    %c0_i32_0 = arith.constant 0 : i32
    return %arg0, %arg1, %c0_i32 : i32, i32, i32
  }
}

</mosaic_0001>

<llo_original>
// kernel: tpu_custom_call.1
$region0: #{tpu_custom_call.1}
  #allocation0 [shape = 'u32[]', space=smem, size = 0x4, offset = 0x4, fixed_abs, tag = 'smem constant byte address 0x4 - core index']
  #allocation1 [shape = 'u32[144,128]{1,0:T(1,128)}', space=vmem, size = 0x12000, scoped, tag = 'internal scratch']
  %s0 = inlined_call_operand.hbm [shape: bf16[2,8,32], index: 0, kind: input, shape index: {}]
  %s1 = inlined_call_operand.hbm [shape: bf16[2,4,8,8], index: 1, kind: input, shape index: {}]
  %s2 = inlined_call_operand.hbm [shape: bf16[2,4,8,8], index: 2, kind: input, shape index: {}]
  %s3 = inlined_call_operand.hbm [shape: bf16[32,32], index: 3, kind: input, shape index: {}]
  %s4 = inlined_call_operand.hbm [shape: bf16[32,32], index: 4, kind: input, shape index: {}]
  %s5 = inlined_call_operand.vmem [shape: f32[1,32], index: 5, kind: input, shape index: {}]
  %s6 = inlined_call_operand.vmem [shape: f32[1,32], index: 6, kind: input, shape index: {}]
  %s7 = inlined_call_operand.hbm [shape: f32[2,8,32], index: 7, kind: output, shape index: {0}]
  %s8 = inlined_call_operand.hbm [shape: f32[2,8,8], index: 8, kind: output, shape index: {1}]
  %9 = xla_tuple %s7, %s8
  %s10 = sld [smem:[#allocation0]]
  $region89: #{tpu_custom_call.1} parent=0
    _
  %s12 = ssub.s32 1, %s10
  %s13 = scalar_select 0, %s12, %s10
  $region1: #{tpu_custom_call.1} parent=0
    #allocation2 [shape = 'u8[4096]{0}', space=vmem, size = 0x1000, scoped, tag = 'input window, operand 0']
    #allocation3 [shape = 's32[2]{0}', space=sflag, size = 0x8, scoped, tag = 'scoped memory for tpu_custom_call.1']
    #allocation4 [shape = 's32[2]{0}', space=sflag, size = 0x8, scoped, tag = 'scoped memory for tpu_custom_call.1']
    #allocation5 [shape = 'u8[16384]{0}', space=vmem, size = 0x4000, scoped, tag = 'input window, operand 1']
    #allocation6 [shape = 's32[2]{0}', space=sflag, size = 0x8, scoped, tag = 'scoped memory for tpu_custom_call.1']
    #allocation7 [shape = 'u8[16384]{0}', space=vmem, size = 0x4000, scoped, tag = 'input window, operand 2']
    #allocation8 [shape = 'u8[8192]{0}', space=vmem, size = 0x2000, scoped, tag = 'input window, operand 3, single buffered']
    #allocation9 [shape = 's32[1]{0}', space=sflag, size = 0x4, scoped, tag = 'scoped memory for tpu_custom_call.1']
    #allocation10 [shape = 'u8[8192]{0}', space=vmem, size = 0x2000, scoped, tag = 'input window, operand 4, single buffered']
    #allocation11 [shape = 'u8[8192]{0}', space=vmem, size = 0x2000, scoped, tag = 'output window, operand 0']
    #allocation12 [shape = 'u8[8192]{0}', space=vmem, size = 0x2000, scoped, tag = 'output window, operand 1']
    #allocation13 [shape = 's32[2]{0}', space=sflag, size = 0x8, scoped, tag = 'scoped memory for tpu_custom_call.1']
    %14 = vsyncpa [#allocation3], 0
    %s15 = scalar_lea.sflag [#allocation3], 1
    %16 = vsyncpa %s15, 0
    %17 = vsyncpa [#allocation6], 0
    %s18 = scalar_lea.sflag [#allocation6], 1
    %19 = vsyncpa %s18, 0
    %20 = vsyncpa [#allocation9], 0
    %21 = vsyncpa [#allocation4], 0
    %s22 = scalar_lea.sflag [#allocation4], 1
    %23 = vsyncpa %s22, 0
    %24 = vsyncpa [#allocation13], 0
    %s25 = scalar_lea.sflag [#allocation13], 1
    %26 = vsyncpa %s25, 0
    loop: start=0, step=1, limit=4
    $region2: #{tpu_custom_call.1} parent=1 // loop_pre_header
      _
    $region3: #{tpu_custom_call.1} parent=1 // loop_header
      %s28 = sphi 0, %s32
      %p29 = scmp.ge.s32.totalorder %s28, 4
      %s35 = sphi 0, %s47
      %s36 = sphi 0, %s43
      %s37 = sphi 0, %s35
      %s38 = sphi 0, %s36
      %s39 = sphi 0, %s37
      %s40 = sphi 0, %s38
      %s52 = sphi 0, %s54
      %s55 = sphi 0, %s52
      %s56 = sphi 0, %s55
      %s72 = sphi 0, %s56
      %s78 = sphi 0, %s80
      %s81 = sphi 0, %s78
      %s82 = sphi 0, %s81
      %s98 = sphi 0, %s82
      %s104 = sphi 0, %s106
      %s107 = sphi 0, %s104
      %s108 = sphi 0, %s107
      %s124 = sphi 0, %s108
      %s128 = sphi 0, %s128
      %s130 = sphi 0, %s128
      %s131 = sphi 0, %s130
      %s145 = sphi 0, %s131
      %s149 = sphi 0, %s149
      %s151 = sphi 0, %s149
      %s152 = sphi 0, %s151
      %s166 = sphi 0, %s152
      %s170 = sphi 0, %s170
      %s172 = sphi 0, %s170
      %s173 = sphi 0, %s172
      %s187 = sphi 0, %s173
      %s191 = sphi 0, %s191
      %s193 = sphi 0, %s191
      %s194 = sphi 0, %s193
      %s208 = sphi 0, %s194
      %s216 = sphi 0, %s218
      %s219 = sphi 0, %s216
      %s220 = sphi 0, %s219
      %s236 = sphi 0, %s220
      %s244 = sphi 0, %s246
      %s247 = sphi 0, %s244
      %s248 = sphi 0, %s247
      %s264 = sphi 0, %s248
    $region4: #{tpu_custom_call.1} parent=1 // loop_header_branch
      %31 = sbr.rel (%p29) target = $region8
    $region5: #{tpu_custom_call.1} parent=1 // loop_body
      %s33 = ssub.s32 %s28, 1
      %s34 = ssub.s32 %s28, 2
      %s41 = sadd.s32 1, %s36
      %p42 = scmp.ge.s32.totalorder %s41, 1
      %s43 = scalar_select %p42, 0, %s41
      %s44 = sadd.s32 1, %s35
      %s45 = scalar_select %p42, %s44, %s35
      %p46 = scmp.ge.s32.totalorder %s45, 2
      %s47 = scalar_select %p46, 0, %s45
      %s48 = ssub.s32 %s35, %s47
      %s49 = ssub.s32 %s36, %s43
      %s50 = sor.u32 %s48, %s49
      %p51 = scmp.eq.s32.totalorder %s50, 0
      %s53 = sadd.s32 %s52, 1
      %s54 = scalar_select %p51, %s52, %s53
      %p57 = pneg %p51
      %p58 = scmp.eq.s32.totalorder %s28, 1
      %p59 = por %p57, %p58
      %p60 = scmp.ne.s32.totalorder %s52, %s55
      %p61 = scmp.eq.s32.totalorder %s28, 0
      %p62 = por %p60, %p61
      %p63 = scmp.ne.s32.totalorder %s52, %s55
      %p64 = scmp.eq.s32.totalorder %s33, 1
      %p65 = por %p63, %p64
      %p66 = scmp.ne.s32.totalorder %s55, %s56
      %p67 = scmp.eq.s32.totalorder %s33, 0
      %p68 = por %p66, %p67
      %p69 = scmp.ne.s32.totalorder %s55, %s56
      %p70 = scmp.eq.s32.totalorder %s34, 1
      %p71 = por %p69, %p70
      %p73 = scmp.ne.s32.totalorder %s56, %s72
      %p74 = scmp.eq.s32.totalorder %s34, 0
      %p75 = por %p73, %p74
      %s76 = ssub.s32 %s35, %s47
      %p77 = scmp.eq.s32.totalorder %s76, 0
      %s79 = sadd.s32 %s78, 1
      %s80 = scalar_select %p77, %s78, %s79
      %p83 = pneg %p77
      %p84 = scmp.eq.s32.totalorder %s28, 1
      %p85 = por %p83, %p84
      %p86 = scmp.ne.s32.totalorder %s78, %s81
      %p87 = scmp.eq.s32.totalorder %s28, 0
      %p88 = por %p86, %p87
      %p89 = scmp.ne.s32.totalorder %s78, %s81
      %p90 = scmp.eq.s32.totalorder %s33, 1
      %p91 = por %p89, %p90
      %p92 = scmp.ne.s32.totalorder %s81, %s82
      %p93 = scmp.eq.s32.totalorder %s33, 0
      %p94 = por %p92, %p93
      %p95 = scmp.ne.s32.totalorder %s81, %s82
      %p96 = scmp.eq.s32.totalorder %s34, 1
      %p97 = por %p95, %p96
      %p99 = scmp.ne.s32.totalorder %s82, %s98
      %p100 = scmp.eq.s32.totalorder %s34, 0
      %p101 = por %p99, %p100
      %s102 = ssub.s32 %s35, %s47
      %p103 = scmp.eq.s32.totalorder %s102, 0
      %s105 = sadd.s32 %s104, 1
      %s106 = scalar_select %p103, %s104, %s105
      %p109 = pneg %p103
      %p110 = scmp.eq.s32.totalorder %s28, 1
      %p111 = por %p109, %p110
      %p112 = scmp.ne.s32.totalorder %s104, %s107
      %p113 = scmp.eq.s32.totalorder %s28, 0
      %p114 = por %p112, %p113
      %p115 = scmp.ne.s32.totalorder %s104, %s107
      %p116 = scmp.eq.s32.totalorder %s33, 1
      %p117 = por %p115, %p116
      %p118 = scmp.ne.s32.totalorder %s107, %s108
      %p119 = scmp.eq.s32.totalorder %s33, 0
      %p120 = por %p118, %p119
      %p121 = scmp.ne.s32.totalorder %s107, %s108
      %p122 = scmp.eq.s32.totalorder %s34, 1
      %p123 = por %p121, %p122
      %p125 = scmp.ne.s32.totalorder %s108, %s124
      %p126 = scmp.eq.s32.totalorder %s34, 0
      %p127 = por %p125, %p126
      %s129 = sadd.s32 %s128, 1
      %p132 = scmp.eq.s32.totalorder %s28, 1
      %p133 = scmp.ne.s32.totalorder %s128, %s130
      %p134 = scmp.eq.s32.totalorder %s28, 0
      %p135 = por %p133, %p134
      %p136 = scmp.ne.s32.totalorder %s128, %s130
      %p137 = scmp.eq.s32.totalorder %s33, 1
      %p138 = por %p136, %p137
      %p139 = scmp.ne.s32.totalorder %s130, %s131
      %p140 = scmp.eq.s32.totalorder %s33, 0
      %p141 = por %p139, %p140
      %p142 = scmp.ne.s32.totalorder %s130, %s131
      %p143 = scmp.eq.s32.totalorder %s34, 1
      %p144 = por %p142, %p143
      %p146 = scmp.ne.s32.totalorder %s131, %s145
      %p147 = scmp.eq.s32.totalorder %s34, 0
      %p148 = por %p146, %p147
      %s150 = sadd.s32 %s149, 1
      %p153 = scmp.eq.s32.totalorder %s28, 1
      %p154 = scmp.ne.s32.totalorder %s149, %s151
      %p155 = scmp.eq.s32.totalorder %s28, 0
      %p156 = por %p154, %p155
      %p157 = scmp.ne.s32.totalorder %s149, %s151
      %p158 = scmp.eq.s32.totalorder %s33, 1
      %p159 = por %p157, %p158
      %p160 = scmp.ne.s32.totalorder %s151, %s152
      %p161 = scmp.eq.s32.totalorder %s33, 0
      %p162 = por %p160, %p161
      %p163 = scmp.ne.s32.totalorder %s151, %s152
      %p164 = scmp.eq.s32.totalorder %s34, 1
      %p165 = por %p163, %p164
      %p167 = scmp.ne.s32.totalorder %s152, %s166
      %p168 = scmp.eq.s32.totalorder %s34, 0
      %p169 = por %p167, %p168
      %s171 = sadd.s32 %s170, 1
      %p174 = scmp.eq.s32.totalorder %s28, 1
      %p175 = scmp.ne.s32.totalorder %s170, %s172
      %p176 = scmp.eq.s32.totalorder %s28, 0
      %p177 = por %p175, %p176
      %p178 = scmp.ne.s32.totalorder %s170, %s172
      %p179 = scmp.eq.s32.totalorder %s33, 1
      %p180 = por %p178, %p179
      %p181 = scmp.ne.s32.totalorder %s172, %s173
      %p182 = scmp.eq.s32.totalorder %s33, 0
      %p183 = por %p181, %p182
      %p184 = scmp.ne.s32.totalorder %s172, %s173
      %p185 = scmp.eq.s32.totalorder %s34, 1
      %p186 = por %p184, %p185
      %p188 = scmp.ne.s32.totalorder %s173, %s187
      %p189 = scmp.eq.s32.totalorder %s34, 0
      %p190 = por %p188, %p189
      %s192 = sadd.s32 %s191, 1
      %p195 = scmp.eq.s32.totalorder %s28, 1
      %p196 = scmp.ne.s32.totalorder %s191, %s193
      %p197 = scmp.eq.s32.totalorder %s28, 0
      %p198 = por %p196, %p197
      %p199 = scmp.ne.s32.totalorder %s191, %s193
      %p200 = scmp.eq.s32.totalorder %s33, 1
      %p201 = por %p199, %p200
      %p202 = scmp.ne.s32.totalorder %s193, %s194
      %p203 = scmp.eq.s32.totalorder %s33, 0
      %p204 = por %p202, %p203
      %p205 = scmp.ne.s32.totalorder %s193, %s194
      %p206 = scmp.eq.s32.totalorder %s34, 1
      %p207 = por %p205, %p206
      %p209 = scmp.ne.s32.totalorder %s194, %s208
      %p210 = scmp.eq.s32.totalorder %s34, 0
      %p211 = por %p209, %p210
      %s212 = ssub.s32 %s35, %s47
      %s213 = ssub.s32 %s36, %s43
      %s214 = sor.u32 %s212, %s213
      %p215 = scmp.eq.s32.totalorder %s214, 0
      %s217 = sadd.s32 %s216, 1
      %s218 = scalar_select %p215, %s216, %s217
      %p221 = pneg %p215
      %p222 = scmp.eq.s32.totalorder %s28, 1
      %p223 = por %p221, %p222
      %p224 = scmp.ne.s32.totalorder %s216, %s219
      %p225 = scmp.eq.s32.totalorder %s28, 0
      %p226 = por %p224, %p225
      %p227 = scmp.ne.s32.totalorder %s216, %s219
      %p228 = scmp.eq.s32.totalorder %s33, 1
      %p229 = por %p227, %p228
      %p230 = scmp.ne.s32.totalorder %s219, %s220
      %p231 = scmp.eq.s32.totalorder %s33, 0
      %p232 = por %p230, %p231
      %p233 = scmp.ne.s32.totalorder %s219, %s220
      %p234 = scmp.eq.s32.totalorder %s34, 1
      %p235 = por %p233, %p234
      %p237 = scmp.ne.s32.totalorder %s220, %s236
      %p238 = scmp.eq.s32.totalorder %s34, 0
      %p239 = por %p237, %p238
      %s240 = ssub.s32 %s35, %s47
      %s241 = ssub.s32 %s36, %s43
      %s242 = sor.u32 %s240, %s241
      %p243 = scmp.eq.s32.totalorder %s242, 0
      %s245 = sadd.s32 %s244, 1
      %s246 = scalar_select %p243, %s244, %s245
      %p249 = pneg %p243
      %p250 = scmp.eq.s32.totalorder %s28, 1
      %p251 = por %p249, %p250
      %p252 = scmp.ne.s32.totalorder %s244, %s247
      %p253 = scmp.eq.s32.totalorder %s28, 0
      %p254 = por %p252, %p253
      %p255 = scmp.ne.s32.totalorder %s244, %s247
      %p256 = scmp.eq.s32.totalorder %s33, 1
      %p257 = por %p255, %p256
      %p258 = scmp.ne.s32.totalorder %s247, %s248
      %p259 = scmp.eq.s32.totalorder %s33, 0
      %p260 = por %p258, %p259
      %p261 = scmp.ne.s32.totalorder %s247, %s248
      %p262 = scmp.eq.s32.totalorder %s34, 1
      %p263 = por %p261, %p262
      %p265 = scmp.ne.s32.totalorder %s248, %s264
      %p266 = scmp.eq.s32.totalorder %s34, 0
      %p267 = por %p265, %p266
      %p268 = scmp.le.s32.totalorder 1, %s28
      %p269 = scmp.lt.s32.totalorder %s28, 3
      %p270 = pnand %p268, %p269
      %p271 = pneg %p270
      // Predicated region
      $region9: #{tpu_custom_call.1} parent=5 // pred_check
        _
      $region10: #{tpu_custom_call.1} parent=5 // pred_check_branch
        %273 = sbr.rel (%p270) target = $region12
      $region11: #{tpu_custom_call.1} parent=5 // pred_region
        %s274 = ssub.s32 %s28, 1
        // Predicated region
        $region13: #{tpu_custom_call.1} parent=11 // pred_check
          %p275 = pneg %p141
        $region14: #{tpu_custom_call.1} parent=11 // pred_check_branch
          %277 = sbr.rel (%p275) target = $region16
        $region15: #{tpu_custom_call.1} parent=11 // pred_region
          %s279 = ssub.s32 256, 256
          %280 = vsyncadd [#allocation9], %s279
          %s281 = sshll.u32 [#allocation8], 4
          %s282 = int_to_ptr.vmem [resolvable:$true] %s281
          %287 = dma.hbm_to_vmem [thread:$0]  %s3, 256, %s282, [#allocation9], 64, 64, 4
        $region16: #{tpu_custom_call.1} parent=11 // pred_fallthru
          _
        // Predicated region
        $region17: #{tpu_custom_call.1} parent=11 // pred_check
          %p288 = pneg %p162
        $region18: #{tpu_custom_call.1} parent=11 // pred_check_branch
          %290 = sbr.rel (%p288) target = $region20
        $region19: #{tpu_custom_call.1} parent=11 // pred_region
          %s292 = ssub.s32 256, 256
          %293 = vsyncadd [#allocation9], %s292
          %s294 = sshll.u32 [#allocation10], 4
          %s295 = int_to_ptr.vmem [resolvable:$true] %s294
          %300 = dma.hbm_to_vmem [thread:$0]  %s4, 256, %s295, [#allocation9], 64, 64, 4
        $region20: #{tpu_custom_call.1} parent=11 // pred_fallthru
          _
        // Predicated region
        $region21: #{tpu_custom_call.1} parent=11 // pred_check
          %p301 = pneg %p183
        $region22: #{tpu_custom_call.1} parent=11 // pred_check_branch
          %303 = sbr.rel (%p301) target = $region24
        $region23: #{tpu_custom_call.1} parent=11 // pred_region
          _
        $region24: #{tpu_custom_call.1} parent=11 // pred_fallthru
          _
        // Predicated region
        $region25: #{tpu_custom_call.1} parent=11 // pred_check
          %p304 = pneg %p204
        $region26: #{tpu_custom_call.1} parent=11 // pred_check_branch
          %306 = sbr.rel (%p304) target = $region28
        $region27: #{tpu_custom_call.1} parent=11 // pred_region
          _
        $region28: #{tpu_custom_call.1} parent=11 // pred_fallthru
          _
      $region12: #{tpu_custom_call.1} parent=5 // pred_fallthru
        _
      %p307 = scmp.lt.s32.totalorder %s28, 2
      // Predicated region
      $region29: #{tpu_custom_call.1} parent=5 // pred_check
        %p308 = pneg %p307
      $region30: #{tpu_custom_call.1} parent=5 // pred_check_branch
        %310 = sbr.rel (%p308) target = $region32
      $region31: #{tpu_custom_call.1} parent=5 // pred_region
        // Predicated region
        $region33: #{tpu_custom_call.1} parent=31 // pred_check
          %p311 = pneg %p62
        $region34: #{tpu_custom_call.1} parent=31 // pred_check_branch
          %313 = sbr.rel (%p311) target = $region36
        $region35: #{tpu_custom_call.1} parent=31 // pred_region
          %s314 = sand.u32 %s52, 1
          %s315 = scalar_lea.sflag [#allocation3], %s314
          %s316 = sand.u32 %s52, 1
          %s317 = smul.addr %s316, 4
          %s318 = scalar_lea.vmem [#allocation2], %s317
          %s320 = ssub.s32 64, 64
          %321 = vsyncadd %s315, %s320
          %s322 = sadd.s32 %s36, %s35
          %s323 = smul.addr %s322, 64
          %s324 = scalar_lea.hbm %s0, %s323
          %s326 = sshll.u32 %s318, 4
          %s327 = int_to_ptr.vmem [resolvable:$true] %s326
          %329 = dma.hbm_to_vmem [thread:$0]  %s324, 64, %s327, %s315
        $region36: #{tpu_custom_call.1} parent=31 // pred_fallthru
          _
        // Predicated region
        $region37: #{tpu_custom_call.1} parent=31 // pred_check
          %p330 = pneg %p88
        $region38: #{tpu_custom_call.1} parent=31 // pred_check_branch
          %332 = sbr.rel (%p330) target = $region40
        $region39: #{tpu_custom_call.1} parent=31 // pred_region
          %s333 = sand.u32 %s28, 1
          %s334 = scalar_lea.sflag [#allocation6], %s333
          %s335 = sand.u32 %s78, 1
          %s336 = smul.addr %s335, 16
          %s337 = scalar_lea.vmem [#allocation5], %s336
          %s339 = ssub.s32 256, 256
          %340 = vsyncadd %s334, %s339
          %s341 = smul.addr %s35, 4
          %s342 = smul.addr %s341, 64
          %s343 = scalar_lea.hbm %s1, %s342
          %s344 = sshll.u32 %s337, 4
          %s345 = int_to_ptr.vmem [resolvable:$true] %s344
          %350 = dma.hbm_to_vmem [thread:$0]  %s343, 256, %s345, %s334, 64, 64, 4
        $region40: #{tpu_custom_call.1} parent=31 // pred_fallthru
          _
        // Predicated region
        $region41: #{tpu_custom_call.1} parent=31 // pred_check
          %p351 = pneg %p114
        $region42: #{tpu_custom_call.1} parent=31 // pred_check_branch
          %353 = sbr.rel (%p351) target = $region44
        $region43: #{tpu_custom_call.1} parent=31 // pred_region
          %s354 = sand.u32 %s28, 1
          %s355 = scalar_lea.sflag [#allocation6], %s354
          %s356 = sand.u32 %s104, 1
          %s357 = smul.addr %s356, 16
          %s358 = scalar_lea.vmem [#allocation7], %s357
          %s360 = ssub.s32 256, 256
          %361 = vsyncadd %s355, %s360
          %s362 = smul.addr %s35, 4
          %s363 = smul.addr %s362, 64
          %s364 = scalar_lea.hbm %s2, %s363
          %s365 = sshll.u32 %s358, 4
          %s366 = int_to_ptr.vmem [resolvable:$true] %s365
          %371 = dma.hbm_to_vmem [thread:$0]  %s364, 256, %s366, %s355, 64, 64, 4
        $region44: #{tpu_custom_call.1} parent=31 // pred_fallthru
          _
      $region32: #{tpu_custom_call.1} parent=5 // pred_fallthru
        _
      %p372 = scmp.le.s32.totalorder 1, %s28
      %p373 = scmp.lt.s32.totalorder %s28, 3
      %p374 = pnand %p372, %p373
      %p375 = pneg %p374
      // Predicated region
      $region45: #{tpu_custom_call.1} parent=5 // pred_check
        _
      $region46: #{tpu_custom_call.1} parent=5 // pred_check_branch
        %377 = sbr.rel (%p374) target = $region48
      $region47: #{tpu_custom_call.1} parent=5 // pred_region
        %s378 = ssub.s32 %s28, 1
        %s379 = sand.u32 %s55, 1
        %s380 = scalar_lea.sflag [#allocation3], %s379
        %s381 = sand.u32 %s55, 1
        %s382 = smul.addr %s381, 4
        %s383 = scalar_lea.vmem [#allocation2], %s382
        // Predicated region
        $region49: #{tpu_custom_call.1} parent=47 // pred_check
          %p384 = pneg %p68
        $region50: #{tpu_custom_call.1} parent=47 // pred_check_branch
          %386 = sbr.rel (%p384) target = $region52
        $region51: #{tpu_custom_call.1} parent=47 // pred_region
          %387 = dma.done %s380, 64
        $region52: #{tpu_custom_call.1} parent=47 // pred_fallthru
          _
        %s388 = sand.u32 %s33, 1
        %s389 = scalar_lea.sflag [#allocation6], %s388
        %s390 = sand.u32 %s81, 1
        %s391 = smul.addr %s390, 16
        %s392 = scalar_lea.vmem [#allocation5], %s391
        // Predicated region
        $region53: #{tpu_custom_call.1} parent=47 // pred_check
          %p393 = pneg %p94
        $region54: #{tpu_custom_call.1} parent=47 // pred_check_branch
          %395 = sbr.rel (%p393) target = $region56
        $region55: #{tpu_custom_call.1} parent=47 // pred_region
          %396 = dma.done %s389, 256
        $region56: #{tpu_custom_call.1} parent=47 // pred_fallthru
          _
        %s397 = sand.u32 %s33, 1
        %s398 = scalar_lea.sflag [#allocation6], %s397
        %s399 = sand.u32 %s107, 1
        %s400 = smul.addr %s399, 16
        %s401 = scalar_lea.vmem [#allocation7], %s400
        // Predicated region
        $region57: #{tpu_custom_call.1} parent=47 // pred_check
          %p402 = pneg %p120
        $region58: #{tpu_custom_call.1} parent=47 // pred_check_branch
          %404 = sbr.rel (%p402) target = $region60
        $region59: #{tpu_custom_call.1} parent=47 // pred_region
          %405 = dma.done %s398, 256
        $region60: #{tpu_custom_call.1} parent=47 // pred_fallthru
          _
        // Predicated region
        $region61: #{tpu_custom_call.1} parent=47 // pred_check
          %p406 = pneg %p141
        $region62: #{tpu_custom_call.1} parent=47 // pred_check_branch
          %408 = sbr.rel (%p406) target = $region64
        $region63: #{tpu_custom_call.1} parent=47 // pred_region
          %409 = dma.done [#allocation9], 256
        $region64: #{tpu_custom_call.1} parent=47 // pred_fallthru
          _
        // Predicated region
        $region65: #{tpu_custom_call.1} parent=47 // pred_check
          %p410 = pneg %p162
        $region66: #{tpu_custom_call.1} parent=47 // pred_check_branch
          %412 = sbr.rel (%p410) target = $region68
        $region67: #{tpu_custom_call.1} parent=47 // pred_region
          %413 = dma.done [#allocation9], 256
        $region68: #{tpu_custom_call.1} parent=47 // pred_fallthru
          _
        %s414 = sand.u32 %s55, 1
        %s415 = scalar_lea.sflag [#allocation3], %s414
        %s416 = sand.u32 %s55, 1
        %s417 = smul.addr %s416, 4
        %s418 = scalar_lea.vmem [#allocation2], %s417
        %p419 = pneg %p68
        %p420 = pneg %p65
        %s421 = sand.u32 %s33, 1
        %s422 = scalar_lea.sflag [#allocation6], %s421
        %s423 = sand.u32 %s81, 1
        %s424 = smul.addr %s423, 16
        %s425 = scalar_lea.vmem [#allocation5], %s424
        %p426 = pneg %p94
        %p427 = pneg %p91
        %s428 = sand.u32 %s33, 1
        %s429 = scalar_lea.sflag [#allocation6], %s428
        %s430 = sand.u32 %s107, 1
        %s431 = smul.addr %s430, 16
        %s432 = scalar_lea.vmem [#allocation7], %s431
        %p433 = pneg %p120
        %p434 = pneg %p117
        %p435 = pneg %p141
        %p436 = pneg %p138
        %p437 = pneg %p162
        %p438 = pneg %p159
        %p439 = pneg %p183
        %p440 = pneg %p180
        %p441 = pneg %p204
        %p442 = pneg %p201
        %p443 = pneg %p232
        %p444 = pneg %p229
        %s445 = sand.u32 %s219, 1
        %s446 = scalar_lea.sflag [#allocation4], %s445
        %s447 = sand.u32 %s219, 1
        %s448 = smul.addr %s447, 8
        %s449 = scalar_lea.vmem [#allocation11], %s448
        %p450 = pneg %p260
        %p451 = pneg %p257
        %s452 = sand.u32 %s247, 1
        %s453 = scalar_lea.sflag [#allocation13], %s452
        %s454 = sand.u32 %s247, 1
        %s455 = smul.addr %s454, 8
        %s456 = scalar_lea.vmem [#allocation12], %s455
        %v458 = vld [vmem:[%s383] sm:$0xf]
        %v459 = vld [vmem:[#allocation8] sm:$0xf]
        %v460 = vld [vmem:[#allocation8 + $0x4] sm:$0xf]
        %v461 = vld [vmem:[#allocation8 + $0x8] sm:$0xf]
        %v462 = vld [vmem:[#allocation8 + $0xc] sm:$0xf]
        %v463 = vld [vmem:[%s5] sm:$0x1]
        %v465 = vlaneseq
        %v466 = vshrl.u32 %v465, 7
        %v467 = vsub.s32 0, %v466
        %v468 = vrot.slane %v463, %v467
        %v474 = vunpack.c.l.b16 %v459
        %v475 = vunpack.c.l.b16 %v460
        %v476 = vunpack.c.l.b16 %v461
        %v477 = vunpack.c.l.b16 %v462
        %v478 = vpack.c.b16 %v475, %v474
        %v479 = vpack.c.b16 %v477, %v476
        %vm482 = vcmask 261120
        %v484 = vsel %vm482, %v458, 0
        %486 = vmatprep.subr.bf16.mxu0 0
        %487 = vmatpush1.bf16.msra.mxu0 0
        %488 = vmatprep.subr.bf16.mxu0 0
        %489 = vmatpush1.bf16.msra.mxu0 0
        %490 = vmatprep.subr.bf16.mxu0 0
        %491 = vmatpush1.bf16.msra.mxu0 0
        %492 = vmatprep.subr.bf16.mxu0 0
        %493 = vmatpush1.bf16.msra.mxu0 0
        %494 = vmatprep.subr.bf16.mxu0 0
        %495 = vmatpush1.bf16.msra.mxu0 0
        %496 = vmatprep.subr.bf16.mxu0 0
        %497 = vmatpush1.bf16.msra.mxu0 0
        %498 = vmatprep.subr.bf16.mxu0 0
        %499 = vmatpush1.bf16.msra.mxu0 %v479
        %500 = vmatprep.subr.bf16.mxu0 0
        %501 = vmatpush1.bf16.msra.mxu0 %v478
        %502 = vmatprep.subr.bf16.mxu0 0
        %503 = vmatpush2.bf16.msra.mxu0 0
        %504 = vmatprep.subr.bf16.mxu0 0
        %505 = vmatpush2.bf16.msra.mxu0 0
        %506 = vmatprep.subr.bf16.mxu0 0
        %507 = vmatpush2.bf16.msra.mxu0 0
        %508 = vmatprep.subr.bf16.mxu0 0
        %509 = vmatpush2.bf16.msra.mxu0 0
        %510 = vmatprep.subr.bf16.mxu0 0
        %511 = vmatpush2.bf16.msra.mxu0 0
        %512 = vmatprep.subr.bf16.mxu0 0
        %513 = vmatpush2.bf16.msra.mxu0 0
        %514 = vmatprep.subr.bf16.mxu0 0
        %515 = vmatpush2.bf16.msra.mxu0 0
        %516 = vmatprep.subr.bf16.mxu0 0
        %517 = vmatpush2.bf16.msra.mxu0 0
        %518 = vmatprep.mubr.bf16.mxu0 0
        %519 = vmatmul.mubr.bf16.gmra.mxu0 %v484
        %v520 = vpop.f32.mrf.mxu0
        %v521 = vadd.f32 %v468, %v520
        %v522 = vpop.f32.mrf.mxu0
        %v523 = vpop.f32.mrf.mxu0
        %v524 = vpop.f32.mrf.mxu0
        %525 = vdwg.mxu0
        %v526 = vpack.c.bf16 %v521, %v521
        %v527 = vld [vmem:[%s392] sm:$0xf]
        %vm528 = vcmask 64512
        %v530 = vsel %vm528, %v526, 0
        %vm532 = vcmask 1043456
        %v534 = vsel %vm532, %v527, 0
        %536 = vmatprep.subr.bf16.mxu0 0
        %537 = vmatpush1.bf16.msra.mxu0 0
        %538 = vmatprep.subr.bf16.mxu0 0
        %539 = vmatpush1.bf16.msra.mxu0 0
        %540 = vmatprep.subr.bf16.mxu0 0
        %541 = vmatpush1.bf16.msra.mxu0 0
        %542 = vmatprep.subr.bf16.mxu0 0
        %543 = vmatpush1.bf16.msra.mxu0 0
        %544 = vmatprep.subr.bf16.mxu0 0
        %545 = vmatpush1.bf16.msra.mxu0 0
        %546 = vmatprep.subr.bf16.mxu0 0
        %547 = vmatpush1.bf16.msra.mxu0 0
        %548 = vmatprep.subr.bf16.mxu0 0
        %549 = vmatpush1.bf16.msra.mxu0 0
        %550 = vmatprep.subr.bf16.mxu0 0
        %551 = vmatpush1.bf16.msra.mxu0 %v534
        %552 = vmatprep.subr.bf16.mxu0 0
        %553 = vmatpush2.bf16.msra.mxu0 0
        %554 = vmatprep.subr.bf16.mxu0 0
        %555 = vmatpush2.bf16.msra.mxu0 0
        %556 = vmatprep.subr.bf16.mxu0 0
        %557 = vmatpush2.bf16.msra.mxu0 0
        %558 = vmatprep.subr.bf16.mxu0 0
        %559 = vmatpush2.bf16.msra.mxu0 0
        %560 = vmatprep.subr.bf16.mxu0 0
        %561 = vmatpush2.bf16.msra.mxu0 0
        %562 = vmatprep.subr.bf16.mxu0 0
        %563 = vmatpush2.bf16.msra.mxu0 0
        %564 = vmatprep.subr.bf16.mxu0 0
        %565 = vmatpush2.bf16.msra.mxu0 0
        %566 = vmatprep.subr.bf16.mxu0 0
        %567 = vmatpush2.bf16.msra.mxu0 0
        %568 = vmatprep.mubr.bf16.mxu0 0
        %569 = vmatmul.mubr.bf16.gmra.mxu0 %v530
        %v570 = vpop.f32.mrf.mxu0
        %v571 = vadd.f32 0.0, %v570
        %v572 = vpop.f32.mrf.mxu0
        %v573 = vpop.f32.mrf.mxu0
        %v574 = vpop.f32.mrf.mxu0
        %575 = vdwg.mxu0
        %v576 = vsel %vm528, %v571, -inf
        %577 = vmax.xlane.f32.xlu0 %v576
        %v578 = vpop.xlane.xlu0 %577
        %v579 = vsub.f32 %v571, %v578
        %v580 = vpack.c.bf16 %v579, %v579
        %v582 = vmul.bf16 %v580, 1069105081
        %v583 = vpow.bf16.pop %v582
        %v584 = vunpack.c.l.bf16 %v583
        %v585 = vsel %vm528, %v584, 0.0
        %586 = vadd.xlane.f32.xlu0 %v585
        %v587 = vpop.xlane.xlu0 %586
        %v588 = vrcp.pop %v587
        %v589 = vld [vmem:[%s401] sm:$0xf]
        %v591 = vsel %vm528, %v583, 0
        %v594 = vsel %vm532, %v589, 0
        %596 = vmatprep.subr.bf16.mxu0 0
        %597 = vmatpush1.bf16.msra.mxu0 0
        %598 = vmatprep.subr.bf16.mxu0 0
        %599 = vmatpush1.bf16.msra.mxu0 0
        %600 = vmatprep.subr.bf16.mxu0 0
        %601 = vmatpush1.bf16.msra.mxu0 0
        %602 = vmatprep.subr.bf16.mxu0 0
        %603 = vmatpush1.bf16.msra.mxu0 0
        %604 = vmatprep.subr.bf16.mxu0 0
        %605 = vmatpush1.bf16.msra.mxu0 0
        %606 = vmatprep.subr.bf16.mxu0 0
        %607 = vmatpush1.bf16.msra.mxu0 0
        %608 = vmatprep.subr.bf16.mxu0 0
        %609 = vmatpush1.bf16.msra.mxu0 0
        %610 = vmatprep.subr.bf16.mxu0 0
        %611 = vmatpush1.bf16.msra.mxu0 %v594
        %612 = vmatprep.subr.bf16.mxu0 0
        %613 = vmatpush2.bf16.msra.mxu0 0
        %614 = vmatprep.subr.bf16.mxu0 0
        %615 = vmatpush2.bf16.msra.mxu0 0
        %616 = vmatprep.subr.bf16.mxu0 0
        %617 = vmatpush2.bf16.msra.mxu0 0
        %618 = vmatprep.subr.bf16.mxu0 0
        %619 = vmatpush2.bf16.msra.mxu0 0
        %620 = vmatprep.subr.bf16.mxu0 0
        %621 = vmatpush2.bf16.msra.mxu0 0
        %622 = vmatprep.subr.bf16.mxu0 0
        %623 = vmatpush2.bf16.msra.mxu0 0
        %624 = vmatprep.subr.bf16.mxu0 0
        %625 = vmatpush2.bf16.msra.mxu0 0
        %626 = vmatprep.subr.bf16.mxu0 0
        %627 = vmatpush2.bf16.msra.mxu0 0
        %628 = vmatprep.mubr.bf16.mxu0 0
        %629 = vmatmul.mubr.bf16.gmra.mxu0 %v591
        %v630 = vpop.f32.mrf.mxu0
        %v631 = vadd.f32 0.0, %v630
        %v632 = vpop.f32.mrf.mxu0
        %v633 = vpop.f32.mrf.mxu0
        %v634 = vpop.f32.mrf.mxu0
        %635 = vdwg.mxu0
        %v636 = vmul.f32 %v631, %v588
        %v637 = vmul.f32 %v584, %v588
        %v638 = vadd.f32 %v637, 0.0
        %s639 = scalar_lea.vmem %s392, 4 [#allocation5]
        %v640 = vld [vmem:[%s639] sm:$0xf]
        %642 = vrot.lane.b32.xlu0 %v526, 120
        %v643 = vpop.permute.xlu0 %642
        %v645 = vsel %vm528, %v643, 0
        %v648 = vsel %vm532, %v640, 0
        %650 = vmatprep.subr.bf16.mxu0 0
        %651 = vmatpush1.bf16.msra.mxu0 0
        %652 = vmatprep.subr.bf16.mxu0 0
        %653 = vmatpush1.bf16.msra.mxu0 0
        %654 = vmatprep.subr.bf16.mxu0 0
        %655 = vmatpush1.bf16.msra.mxu0 0
        %656 = vmatprep.subr.bf16.mxu0 0
        %657 = vmatpush1.bf16.msra.mxu0 0
        %658 = vmatprep.subr.bf16.mxu0 0
        %659 = vmatpush1.bf16.msra.mxu0 0
        %660 = vmatprep.subr.bf16.mxu0 0
        %661 = vmatpush1.bf16.msra.mxu0 0
        %662 = vmatprep.subr.bf16.mxu0 0
        %663 = vmatpush1.bf16.msra.mxu0 0
        %664 = vmatprep.subr.bf16.mxu0 0
        %665 = vmatpush1.bf16.msra.mxu0 %v648
        %666 = vmatprep.subr.bf16.mxu0 0
        %667 = vmatpush2.bf16.msra.mxu0 0
        %668 = vmatprep.subr.bf16.mxu0 0
        %669 = vmatpush2.bf16.msra.mxu0 0
        %670 = vmatprep.subr.bf16.mxu0 0
        %671 = vmatpush2.bf16.msra.mxu0 0
        %672 = vmatprep.subr.bf16.mxu0 0
        %673 = vmatpush2.bf16.msra.mxu0 0
        %674 = vmatprep.subr.bf16.mxu0 0
        %675 = vmatpush2.bf16.msra.mxu0 0
        %676 = vmatprep.subr.bf16.mxu0 0
        %677 = vmatpush2.bf16.msra.mxu0 0
        %678 = vmatprep.subr.bf16.mxu0 0
        %679 = vmatpush2.bf16.msra.mxu0 0
        %680 = vmatprep.subr.bf16.mxu0 0
        %681 = vmatpush2.bf16.msra.mxu0 0
        %682 = vmatprep.mubr.bf16.mxu0 0
        %683 = vmatmul.mubr.bf16.gmra.mxu0 %v645
        %v684 = vpop.f32.mrf.mxu0
        %v685 = vadd.f32 0.0, %v684
        %v686 = vpop.f32.mrf.mxu0
        %v687 = vpop.f32.mrf.mxu0
        %v688 = vpop.f32.mrf.mxu0
        %689 = vdwg.mxu0
        %v690 = vsel %vm528, %v685, -inf
        %691 = vmax.xlane.f32.xlu0 %v690
        %v692 = vpop.xlane.xlu0 %691
        %v693 = vsub.f32 %v685, %v692
        %v694 = vpack.c.bf16 %v693, %v693
        %v696 = vmul.bf16 %v694, 1069105081
        %v697 = vpow.bf16.pop %v696
        %v698 = vunpack.c.l.bf16 %v697
        %v699 = vsel %vm528, %v698, 0.0
        %700 = vadd.xlane.f32.xlu0 %v699
        %v701 = vpop.xlane.xlu0 %700
        %v702 = vrcp.pop %v701
        %s703 = scalar_lea.vmem %s401, 4 [#allocation7]
        %v704 = vld [vmem:[%s703] sm:$0xf]
        %v706 = vsel %vm528, %v697, 0
        %v709 = vsel %vm532, %v704, 0
        %711 = vmatprep.subr.bf16.mxu0 0
        %712 = vmatpush1.bf16.msra.mxu0 0
        %713 = vmatprep.subr.bf16.mxu0 0
        %714 = vmatpush1.bf16.msra.mxu0 0
        %715 = vmatprep.subr.bf16.mxu0 0
        %716 = vmatpush1.bf16.msra.mxu0 0
        %717 = vmatprep.subr.bf16.mxu0 0
        %718 = vmatpush1.bf16.msra.mxu0 0
        %719 = vmatprep.subr.bf16.mxu0 0
        %720 = vmatpush1.bf16.msra.mxu0 0
        %721 = vmatprep.subr.bf16.mxu0 0
        %722 = vmatpush1.bf16.msra.mxu0 0
        %723 = vmatprep.subr.bf16.mxu0 0
        %724 = vmatpush1.bf16.msra.mxu0 0
        %725 = vmatprep.subr.bf16.mxu0 0
        %726 = vmatpush1.bf16.msra.mxu0 %v709
        %727 = vmatprep.subr.bf16.mxu0 0
        %728 = vmatpush2.bf16.msra.mxu0 0
        %729 = vmatprep.subr.bf16.mxu0 0
        %730 = vmatpush2.bf16.msra.mxu0 0
        %731 = vmatprep.subr.bf16.mxu0 0
        %732 = vmatpush2.bf16.msra.mxu0 0
        %733 = vmatprep.subr.bf16.mxu0 0
        %734 = vmatpush2.bf16.msra.mxu0 0
        %735 = vmatprep.subr.bf16.mxu0 0
        %736 = vmatpush2.bf16.msra.mxu0 0
        %737 = vmatprep.subr.bf16.mxu0 0
        %738 = vmatpush2.bf16.msra.mxu0 0
        %739 = vmatprep.subr.bf16.mxu0 0
        %740 = vmatpush2.bf16.msra.mxu0 0
        %741 = vmatprep.subr.bf16.mxu0 0
        %742 = vmatpush2.bf16.msra.mxu0 0
        %743 = vmatprep.mubr.bf16.mxu0 0
        %744 = vmatmul.mubr.bf16.gmra.mxu0 %v706
        %v745 = vpop.f32.mrf.mxu0
        %v746 = vadd.f32 0.0, %v745
        %v747 = vpop.f32.mrf.mxu0
        %v748 = vpop.f32.mrf.mxu0
        %v749 = vpop.f32.mrf.mxu0
        %750 = vdwg.mxu0
        %v751 = vmul.f32 %v746, %v702
        %v752 = vmul.f32 %v698, %v702
        %v753 = vadd.f32 %v638, %v752
        %s754 = scalar_lea.vmem %s392, 8 [#allocation5]
        %v755 = vld [vmem:[%s754] sm:$0xf]
        %756 = vrot.lane.b32.xlu0 %v526, 112
        %v757 = vpop.permute.xlu0 %756
        %v759 = vsel %vm528, %v757, 0
        %v762 = vsel %vm532, %v755, 0
        %764 = vmatprep.subr.bf16.mxu0 0
        %765 = vmatpush1.bf16.msra.mxu0 0
        %766 = vmatprep.subr.bf16.mxu0 0
        %767 = vmatpush1.bf16.msra.mxu0 0
        %768 = vmatprep.subr.bf16.mxu0 0
        %769 = vmatpush1.bf16.msra.mxu0 0
        %770 = vmatprep.subr.bf16.mxu0 0
        %771 = vmatpush1.bf16.msra.mxu0 0
        %772 = vmatprep.subr.bf16.mxu0 0
        %773 = vmatpush1.bf16.msra.mxu0 0
        %774 = vmatprep.subr.bf16.mxu0 0
        %775 = vmatpush1.bf16.msra.mxu0 0
        %776 = vmatprep.subr.bf16.mxu0 0
        %777 = vmatpush1.bf16.msra.mxu0 0
        %778 = vmatprep.subr.bf16.mxu0 0
        %779 = vmatpush1.bf16.msra.mxu0 %v762
        %780 = vmatprep.subr.bf16.mxu0 0
        %781 = vmatpush2.bf16.msra.mxu0 0
        %782 = vmatprep.subr.bf16.mxu0 0
        %783 = vmatpush2.bf16.msra.mxu0 0
        %784 = vmatprep.subr.bf16.mxu0 0
        %785 = vmatpush2.bf16.msra.mxu0 0
        %786 = vmatprep.subr.bf16.mxu0 0
        %787 = vmatpush2.bf16.msra.mxu0 0
        %788 = vmatprep.subr.bf16.mxu0 0
        %789 = vmatpush2.bf16.msra.mxu0 0
        %790 = vmatprep.subr.bf16.mxu0 0
        %791 = vmatpush2.bf16.msra.mxu0 0
        %792 = vmatprep.subr.bf16.mxu0 0
        %793 = vmatpush2.bf16.msra.mxu0 0
        %794 = vmatprep.subr.bf16.mxu0 0
        %795 = vmatpush2.bf16.msra.mxu0 0
        %796 = vmatprep.mubr.bf16.mxu0 0
        %797 = vmatmul.mubr.bf16.gmra.mxu0 %v759
        %v798 = vpop.f32.mrf.mxu0
        %v799 = vadd.f32 0.0, %v798
        %v800 = vpop.f32.mrf.mxu0
        %v801 = vpop.f32.mrf.mxu0
        %v802 = vpop.f32.mrf.mxu0
        %803 = vdwg.mxu0
        %v804 = vsel %vm528, %v799, -inf
        %805 = vmax.xlane.f32.xlu0 %v804
        %v806 = vpop.xlane.xlu0 %805
        %v807 = vsub.f32 %v799, %v806
        %v808 = vpack.c.bf16 %v807, %v807
        %v810 = vmul.bf16 %v808, 1069105081
        %v811 = vpow.bf16.pop %v810
        %v812 = vunpack.c.l.bf16 %v811
        %v813 = vsel %vm528, %v812, 0.0
        %814 = vadd.xlane.f32.xlu0 %v813
        %v815 = vpop.xlane.xlu0 %814
        %v816 = vrcp.pop %v815
        %s817 = scalar_lea.vmem %s401, 8 [#allocation7]
        %v818 = vld [vmem:[%s817] sm:$0xf]
        %v820 = vsel %vm528, %v811, 0
        %v823 = vsel %vm532, %v818, 0
        %825 = vmatprep.subr.bf16.mxu0 0
        %826 = vmatpush1.bf16.msra.mxu0 0
        %827 = vmatprep.subr.bf16.mxu0 0
        %828 = vmatpush1.bf16.msra.mxu0 0
        %829 = vmatprep.subr.bf16.mxu0 0
        %830 = vmatpush1.bf16.msra.mxu0 0
        %831 = vmatprep.subr.bf16.mxu0 0
        %832 = vmatpush1.bf16.msra.mxu0 0
        %833 = vmatprep.subr.bf16.mxu0 0
        %834 = vmatpush1.bf16.msra.mxu0 0
        %835 = vmatprep.subr.bf16.mxu0 0
        %836 = vmatpush1.bf16.msra.mxu0 0
        %837 = vmatprep.subr.bf16.mxu0 0
        %838 = vmatpush1.bf16.msra.mxu0 0
        %839 = vmatprep.subr.bf16.mxu0 0
        %840 = vmatpush1.bf16.msra.mxu0 %v823
        %841 = vmatprep.subr.bf16.mxu0 0
        %842 = vmatpush2.bf16.msra.mxu0 0
        %843 = vmatprep.subr.bf16.mxu0 0
        %844 = vmatpush2.bf16.msra.mxu0 0
        %845 = vmatprep.subr.bf16.mxu0 0
        %846 = vmatpush2.bf16.msra.mxu0 0
        %847 = vmatprep.subr.bf16.mxu0 0
        %848 = vmatpush2.bf16.msra.mxu0 0
        %849 = vmatprep.subr.bf16.mxu0 0
        %850 = vmatpush2.bf16.msra.mxu0 0
        %851 = vmatprep.subr.bf16.mxu0 0
        %852 = vmatpush2.bf16.msra.mxu0 0
        %853 = vmatprep.subr.bf16.mxu0 0
        %854 = vmatpush2.bf16.msra.mxu0 0
        %855 = vmatprep.subr.bf16.mxu0 0
        %856 = vmatpush2.bf16.msra.mxu0 0
        %857 = vmatprep.mubr.bf16.mxu0 0
        %858 = vmatmul.mubr.bf16.gmra.mxu0 %v820
        %v859 = vpop.f32.mrf.mxu0
        %v860 = vadd.f32 0.0, %v859
        %v861 = vpop.f32.mrf.mxu0
        %v862 = vpop.f32.mrf.mxu0
        %v863 = vpop.f32.mrf.mxu0
        %864 = vdwg.mxu0
        %v865 = vmul.f32 %v860, %v816
        %v866 = vmul.f32 %v812, %v816
        %v867 = vadd.f32 %v753, %v866
        %s868 = scalar_lea.vmem %s392, 12 [#allocation5]
        %v869 = vld [vmem:[%s868] sm:$0xf]
        %870 = vrot.lane.b32.xlu0 %v526, 104
        %v871 = vpop.permute.xlu0 %870
        %v873 = vsel %vm528, %v871, 0
        %v876 = vsel %vm532, %v869, 0
        %878 = vmatprep.subr.bf16.mxu0 0
        %879 = vmatpush1.bf16.msra.mxu0 0
        %880 = vmatprep.subr.bf16.mxu0 0
        %881 = vmatpush1.bf16.msra.mxu0 0
        %882 = vmatprep.subr.bf16.mxu0 0
        %883 = vmatpush1.bf16.msra.mxu0 0
        %884 = vmatprep.subr.bf16.mxu0 0
        %885 = vmatpush1.bf16.msra.mxu0 0
        %886 = vmatprep.subr.bf16.mxu0 0
        %887 = vmatpush1.bf16.msra.mxu0 0
        %888 = vmatprep.subr.bf16.mxu0 0
        %889 = vmatpush1.bf16.msra.mxu0 0
        %890 = vmatprep.subr.bf16.mxu0 0
        %891 = vmatpush1.bf16.msra.mxu0 0
        %892 = vmatprep.subr.bf16.mxu0 0
        %893 = vmatpush1.bf16.msra.mxu0 %v876
        %894 = vmatprep.subr.bf16.mxu0 0
        %895 = vmatpush2.bf16.msra.mxu0 0
        %896 = vmatprep.subr.bf16.mxu0 0
        %897 = vmatpush2.bf16.msra.mxu0 0
        %898 = vmatprep.subr.bf16.mxu0 0
        %899 = vmatpush2.bf16.msra.mxu0 0
        %900 = vmatprep.subr.bf16.mxu0 0
        %901 = vmatpush2.bf16.msra.mxu0 0
        %902 = vmatprep.subr.bf16.mxu0 0
        %903 = vmatpush2.bf16.msra.mxu0 0
        %904 = vmatprep.subr.bf16.mxu0 0
        %905 = vmatpush2.bf16.msra.mxu0 0
        %906 = vmatprep.subr.bf16.mxu0 0
        %907 = vmatpush2.bf16.msra.mxu0 0
        %908 = vmatprep.subr.bf16.mxu0 0
        %909 = vmatpush2.bf16.msra.mxu0 0
        %910 = vmatprep.mubr.bf16.mxu0 0
        %911 = vmatmul.mubr.bf16.gmra.mxu0 %v873
        %v912 = vpop.f32.mrf.mxu0
        %v913 = vadd.f32 0.0, %v912
        %v914 = vpop.f32.mrf.mxu0
        %v915 = vpop.f32.mrf.mxu0
        %v916 = vpop.f32.mrf.mxu0
        %917 = vdwg.mxu0
        %v918 = vsel %vm528, %v913, -inf
        %919 = vmax.xlane.f32.xlu0 %v918
        %v920 = vpop.xlane.xlu0 %919
        %v921 = vsub.f32 %v913, %v920
        %v922 = vpack.c.bf16 %v921, %v921
        %v924 = vmul.bf16 %v922, 1069105081
        %v925 = vpow.bf16.pop %v924
        %v926 = vunpack.c.l.bf16 %v925
        %v927 = vsel %vm528, %v926, 0.0
        %928 = vadd.xlane.f32.xlu0 %v927
        %v929 = vpop.xlane.xlu0 %928
        %v930 = vrcp.pop %v929
        %s931 = scalar_lea.vmem %s401, 12 [#allocation7]
        %v932 = vld [vmem:[%s931] sm:$0xf]
        %v934 = vsel %vm528, %v925, 0
        %v937 = vsel %vm532, %v932, 0
        %939 = vmatprep.subr.bf16.mxu0 0
        %940 = vmatpush1.bf16.msra.mxu0 0
        %941 = vmatprep.subr.bf16.mxu0 0
        %942 = vmatpush1.bf16.msra.mxu0 0
        %943 = vmatprep.subr.bf16.mxu0 0
        %944 = vmatpush1.bf16.msra.mxu0 0
        %945 = vmatprep.subr.bf16.mxu0 0
        %946 = vmatpush1.bf16.msra.mxu0 0
        %947 = vmatprep.subr.bf16.mxu0 0
        %948 = vmatpush1.bf16.msra.mxu0 0
        %949 = vmatprep.subr.bf16.mxu0 0
        %950 = vmatpush1.bf16.msra.mxu0 0
        %951 = vmatprep.subr.bf16.mxu0 0
        %952 = vmatpush1.bf16.msra.mxu0 0
        %953 = vmatprep.subr.bf16.mxu0 0
        %954 = vmatpush1.bf16.msra.mxu0 %v937
        %955 = vmatprep.subr.bf16.mxu0 0
        %956 = vmatpush2.bf16.msra.mxu0 0
        %957 = vmatprep.subr.bf16.mxu0 0
        %958 = vmatpush2.bf16.msra.mxu0 0
        %959 = vmatprep.subr.bf16.mxu0 0
        %960 = vmatpush2.bf16.msra.mxu0 0
        %961 = vmatprep.subr.bf16.mxu0 0
        %962 = vmatpush2.bf16.msra.mxu0 0
        %963 = vmatprep.subr.bf16.mxu0 0
        %964 = vmatpush2.bf16.msra.mxu0 0
        %965 = vmatprep.subr.bf16.mxu0 0
        %966 = vmatpush2.bf16.msra.mxu0 0
        %967 = vmatprep.subr.bf16.mxu0 0
        %968 = vmatpush2.bf16.msra.mxu0 0
        %969 = vmatprep.subr.bf16.mxu0 0
        %970 = vmatpush2.bf16.msra.mxu0 0
        %971 = vmatprep.mubr.bf16.mxu0 0
        %972 = vmatmul.mubr.bf16.gmra.mxu0 %v934
        %v973 = vpop.f32.mrf.mxu0
        %v974 = vadd.f32 0.0, %v973
        %v975 = vpop.f32.mrf.mxu0
        %v976 = vpop.f32.mrf.mxu0
        %v977 = vpop.f32.mrf.mxu0
        %978 = vdwg.mxu0
        %v979 = vmul.f32 %v974, %v930
        %v980 = vmul.f32 %v926, %v930
        %v981 = vadd.f32 %v867, %v980
        %983 = vrot.lane.b32.xlu0 %v751, 8
        %v984 = vpop.permute.xlu0 %983
        %987 = vrot.lane.b32.xlu0 %v865, 16
        %v988 = vpop.permute.xlu0 %987
        %991 = vrot.lane.b32.xlu0 %v979, 24
        %v992 = vpop.permute.xlu0 %991
        %v994 = vsel %vm528, %v636, %v984
        %vm995 = vcmask 130048
        %v996 = vsel %vm995, %v994, %v988
        %vm997 = vcmask 195584
        %v998 = vsel %vm997, %v996, %v992
        %v999 = vpack.c.bf16 %v998, %v998
        %v1000 = vld [vmem:[#allocation10] sm:$0xf]
        %v1001 = vld [vmem:[#allocation10 + $0x4] sm:$0xf]
        %v1002 = vld [vmem:[#allocation10 + $0x8] sm:$0xf]
        %v1003 = vld [vmem:[#allocation10 + $0xc] sm:$0xf]
        %v1004 = vld [vmem:[%s6] sm:$0x1]
        %v1006 = vlaneseq
        %v1007 = vshrl.u32 %v1006, 7
        %v1008 = vsub.s32 0, %v1007
        %v1009 = vrot.slane %v1004, %v1008
        %v1015 = vunpack.c.l.b16 %v1000
        %v1016 = vunpack.c.l.b16 %v1001
        %v1017 = vunpack.c.l.b16 %v1002
        %v1018 = vunpack.c.l.b16 %v1003
        %v1019 = vpack.c.b16 %v1016, %v1015
        %v1020 = vpack.c.b16 %v1018, %v1017
        %v1024 = vsel %vm482, %v999, 0
        %1026 = vmatprep.subr.bf16.mxu0 0
        %1027 = vmatpush1.bf16.msra.mxu0 0
        %1028 = vmatprep.subr.bf16.mxu0 0
        %1029 = vmatpush1.bf16.msra.mxu0 0
        %1030 = vmatprep.subr.bf16.mxu0 0
        %1031 = vmatpush1.bf16.msra.mxu0 0
        %1032 = vmatprep.subr.bf16.mxu0 0
        %1033 = vmatpush1.bf16.msra.mxu0 0
        %1034 = vmatprep.subr.bf16.mxu0 0
        %1035 = vmatpush1.bf16.msra.mxu0 0
        %1036 = vmatprep.subr.bf16.mxu0 0
        %1037 = vmatpush1.bf16.msra.mxu0 0
        %1038 = vmatprep.subr.bf16.mxu0 0
        %1039 = vmatpush1.bf16.msra.mxu0 %v1020
        %1040 = vmatprep.subr.bf16.mxu0 0
        %1041 = vmatpush1.bf16.msra.mxu0 %v1019
        %1042 = vmatprep.subr.bf16.mxu0 0
        %1043 = vmatpush2.bf16.msra.mxu0 0
        %1044 = vmatprep.subr.bf16.mxu0 0
        %1045 = vmatpush2.bf16.msra.mxu0 0
        %1046 = vmatprep.subr.bf16.mxu0 0
        %1047 = vmatpush2.bf16.msra.mxu0 0
        %1048 = vmatprep.subr.bf16.mxu0 0
        %1049 = vmatpush2.bf16.msra.mxu0 0
        %1050 = vmatprep.subr.bf16.mxu0 0
        %1051 = vmatpush2.bf16.msra.mxu0 0
        %1052 = vmatprep.subr.bf16.mxu0 0
        %1053 = vmatpush2.bf16.msra.mxu0 0
        %1054 = vmatprep.subr.bf16.mxu0 0
        %1055 = vmatpush2.bf16.msra.mxu0 0
        %1056 = vmatprep.subr.bf16.mxu0 0
        %1057 = vmatpush2.bf16.msra.mxu0 0
        %1058 = vmatprep.mubr.bf16.mxu0 0
        %1059 = vmatmul.mubr.bf16.gmra.mxu0 %v1024
        %v1060 = vpop.f32.mrf.mxu0
        %v1061 = vadd.f32 %v1009, %v1060
        %v1062 = vpop.f32.mrf.mxu0
        %v1063 = vpop.f32.mrf.mxu0
        %v1064 = vpop.f32.mrf.mxu0
        %1065 = vdwg.mxu0
        %1066 = vst.msk [vmem:[%s449] sm:$0xff] %vm482, %v1061
        %v1067 = vmul.f32 %v981, 0.25
        %1068 = vst.msk [vmem:[%s456] sm:$0xff] %vm528, %v1067
        %s1069 = sand.u32 %s219, 1
        %s1070 = scalar_lea.sflag [#allocation4], %s1069
        %s1071 = sand.u32 %s219, 1
        %s1072 = smul.addr %s1071, 8
        %s1073 = scalar_lea.vmem [#allocation11], %s1072
        %s1074 = sand.u32 %s247, 1
        %s1075 = scalar_lea.sflag [#allocation13], %s1074
        %s1076 = sand.u32 %s247, 1
        %s1077 = smul.addr %s1076, 8
        %s1078 = scalar_lea.vmem [#allocation12], %s1077
        // Predicated region
        $region69: #{tpu_custom_call.1} parent=47 // pred_check
          %p1079 = pneg %p229
        $region70: #{tpu_custom_call.1} parent=47 // pred_check_branch
          %1081 = sbr.rel (%p1079) target = $region72
        $region71: #{tpu_custom_call.1} parent=47 // pred_region
          %s1083 = ssub.s32 128, 128
          %1084 = vsyncadd %s1070, %s1083
          %s1085 = sadd.s32 %s38, %s37
          %s1086 = smul.addr %s1085, 128
          %s1087 = scalar_lea.hbm %s7, %s1086
          %s1089 = sshll.u32 %s1073, 4
          %s1090 = int_to_ptr.vmem [resolvable:$true] %s1089
          %1092 = dma.vmem_to_hbm [thread:$0]  %s1090, 128, %s1087, %s1070
        $region72: #{tpu_custom_call.1} parent=47 // pred_fallthru
          _
        // Predicated region
        $region73: #{tpu_custom_call.1} parent=47 // pred_check
          %p1093 = pneg %p257
        $region74: #{tpu_custom_call.1} parent=47 // pred_check_branch
          %1095 = sbr.rel (%p1093) target = $region76
        $region75: #{tpu_custom_call.1} parent=47 // pred_region
          %s1097 = ssub.s32 128, 128
          %1098 = vsyncadd %s1075, %s1097
          %s1099 = sadd.s32 %s38, %s37
          %s1100 = smul.addr %s1099, 128
          %s1101 = scalar_lea.hbm %s8, %s1100
          %s1103 = sshll.u32 %s1078, 4
          %s1104 = int_to_ptr.vmem [resolvable:$true] %s1103
          %1106 = dma.vmem_to_hbm [thread:$0]  %s1104, 128, %s1101, %s1075
        $region76: #{tpu_custom_call.1} parent=47 // pred_fallthru
          _
      $region48: #{tpu_custom_call.1} parent=5 // pred_fallthru
        _
      %p1107 = scmp.le.s32.totalorder 2, %s28
      // Predicated region
      $region77: #{tpu_custom_call.1} parent=5 // pred_check
        %p1108 = pneg %p1107
      $region78: #{tpu_custom_call.1} parent=5 // pred_check_branch
        %1110 = sbr.rel (%p1108) target = $region80
      $region79: #{tpu_custom_call.1} parent=5 // pred_region
        %s1111 = ssub.s32 %s28, 2
        // Predicated region
        $region81: #{tpu_custom_call.1} parent=79 // pred_check
          %p1112 = pneg %p235
        $region82: #{tpu_custom_call.1} parent=79 // pred_check_branch
          %1114 = sbr.rel (%p1112) target = $region84
        $region83: #{tpu_custom_call.1} parent=79 // pred_region
          %s1115 = sand.u32 %s220, 1
          %s1116 = scalar_lea.sflag [#allocation4], %s1115
          %s1117 = sand.u32 %s220, 1
          %s1118 = smul.addr %s1117, 8
          %s1119 = scalar_lea.vmem [#allocation11], %s1118
          %1120 = dma.done %s1116, 128
        $region84: #{tpu_custom_call.1} parent=79 // pred_fallthru
          _
        // Predicated region
        $region85: #{tpu_custom_call.1} parent=79 // pred_check
          %p1121 = pneg %p263
        $region86: #{tpu_custom_call.1} parent=79 // pred_check_branch
          %1123 = sbr.rel (%p1121) target = $region88
        $region87: #{tpu_custom_call.1} parent=79 // pred_region
          %s1124 = sand.u32 %s248, 1
          %s1125 = scalar_lea.sflag [#allocation13], %s1124
          %s1126 = sand.u32 %s248, 1
          %s1127 = smul.addr %s1126, 8
          %s1128 = scalar_lea.vmem [#allocation12], %s1127
          %1129 = dma.done %s1125, 128
        $region88: #{tpu_custom_call.1} parent=79 // pred_fallthru
          _
      $region80: #{tpu_custom_call.1} parent=5 // pred_fallthru
        _
    $region6: #{tpu_custom_call.1} parent=1 // loop_footer
      %s32 = sadd.s32 1, %s28
    $region7: #{tpu_custom_call.1} parent=1 // loop_footer_branch
      %27 = sbr.rel target = $region3
    $region8: #{tpu_custom_call.1} parent=1 // loop_exit
      _
    %1130 = vsyncpa [#allocation3], 1
    %s1131 = scalar_lea.sflag [#allocation3], 1
    %1132 = vsyncpa %s1131, 1
    %1133 = vsyncpa [#allocation6], 1
    %s1134 = scalar_lea.sflag [#allocation6], 1
    %1135 = vsyncpa %s1134, 1
    %1136 = vsyncpa [#allocation9], 1
    %1137 = vsyncpa [#allocation4], 1
    %s1138 = scalar_lea.sflag [#allocation4], 1
    %1139 = vsyncpa %s1138, 1
    %1140 = vsyncpa [#allocation13], 1
    %s1141 = scalar_lea.sflag [#allocation13], 1
    %1142 = vsyncpa %s1141, 1

</llo_original>
